<compile_context>
chip_gen: v6e
topology: v6e:2x2x1
jax: 0.10.0
libtpu: 0.0.40
codegen_flags: <defaults>
</compile_context>

<pallas_src>
import functools

import numpy as np
import jax
import jax.numpy as jnp
from jax import lax
from jax.experimental import pallas as pl
from jax.experimental.pallas import tpu as pltpu


def _round_up(x, m):
    return ((x + m - 1) // m) * m


def _pick_batch_block(N):
    """Batch elements per grid step.  Single-TC chips (v5e/v6e): fold the whole
    batch into one step (grid overhead dominates at toy shapes).  Megacore
    chips (v4/v5p/v7x): keep >=2 steps so both TensorCores get work."""
    if N <= 1:
        return 1
    try:
        kind = jax.devices()[0].device_kind.lower()
    except Exception:
        kind = ""
    single_tc = ("lite" in kind) or ("v5e" in kind) or ("v6e" in kind)
    blk = N if single_tc else max(1, N // 2)
    while N % blk:                      # largest divisor of N <= target
        blk -= 1
    return blk


def _tap_and_seg_masks(H, W, n_seg, dtype):
    """Rows 0..8: border-validity masks for the 9 taps of a 3x3 'same' conv
    (1.0 iff the tap reads an in-bounds pixel).  Row 9: pred-segment selector
    (segments alternate pred/targ, each HW lanes).  Numpy at trace time ->
    baked-in constants, no in-kernel integer div/mod."""
    HW = H * W
    flat = np.arange(n_seg * HW)
    local = flat % HW
    h, w = local // W, local % W
    rows = []
    for oy in (-1, 0, 1):
        for ox in (-1, 0, 1):
            rows.append(((h + oy >= 0) & (h + oy < H) &
                         (w + ox >= 0) & (w + ox < W)).astype(np.float32))
    rows.append(((flat // HW) % 2 == 0).astype(np.float32))     # pred lanes
    return jnp.asarray(np.stack(rows, axis=0), dtype=dtype)     # (10, n_seg*HW)


# ---------------------------------------------------------------------------
# fused kernel: [conv3x3+ReLU] x2 for pred & target, then pixel-wise MSE
# ---------------------------------------------------------------------------
def _content_loss_kernel(x_ref, masks_ref, w1_ref, b1_ref, w2_ref, b2_ref,
                         o_ref, patches_ref, *, H, W, inv_total, mxu_dtype):
    # x_ref       : (Cpad, L) f32, L = batch_block * 2 * H*W lanes laid out as
    #               [b0 pred | b0 targ | b1 pred | b1 targ | ...]
    # masks_ref   : (10, L) f32  (9 tap masks + pred-segment selector)
    # w*_ref      : (Cpad, 9*Cpad) mxu_dtype im2col weights (tap-major K)
    # b*_ref      : (Cpad, 1) f32
    # o_ref       : (1, 1) f32 per-block partial of the mean
    # patches_ref : (9*Cpad, L) mxu_dtype VMEM scratch (MXU rhs operand)
    HW = H * W
    cpad = x_ref.shape[0]
    L = x_ref.shape[1]
    offs = tuple(oy * W + ox for oy in (-1, 0, 1) for ox in (-1, 0, 1))

    x = x_ref[...]                                   # (Cpad, L) f32
    masks = masks_ref[...]                           # hoisted once

    def conv3x3_relu(feat, w_ref, b_ref):
        # 'same' padding via XLU lane rolls + precomputed border masks; each
        # masked tap is stored straight into the MXU operand scratch (one tap
        # live at a time), then one im2col matmul (K = 9*Cpad, N = L lanes).
        for t in range(9):
            if offs[t] == 0:                         # center tap: mask == 1
                piece = feat
            else:
                rolled = pltpu.roll(feat, (-offs[t]) % L, axis=1)
                piece = masks[t:t + 1, :] * rolled
            patches_ref[pl.ds(t * cpad, cpad), :] = piece.astype(mxu_dtype)
        y = jnp.dot(w_ref[...], patches_ref[...],
                    preferred_element_type=jnp.float32)          # (Cpad, L) f32
        return jnp.maximum(y + b_ref[...], 0.0)

    f1 = conv3x3_relu(x, w1_ref, b1_ref)
    f2 = conv3x3_relu(f1, w2_ref, b2_ref)

    # fake - real: each pred segment minus the targ segment HW lanes to its
    # right (one more XLU roll); non-pred lanes are zeroed by the selector.
    d = (f2 - pltpu.roll(f2, (L - HW) % L, axis=1)) * masks[9:10, :]
    o_ref[...] = jnp.sum(d * d, axis=(0, 1), keepdims=True) * inv_total


# ---------------------------------------------------------------------------
# wrapper: ContentLoss.forward == MSE(VGG(pred), VGG(target))
# ---------------------------------------------------------------------------
def content_loss(pred_nchw, target_nchw, params, *,
                 mxu_dtype=jnp.bfloat16, batch_block=None):
    """PyTorch-style NCHW inputs.  mxu_dtype=jnp.bfloat16 (default) gives
    full-rate MXU with f32 accumulation; pass jnp.float32 for a bit-tighter
    numerics."""
    w1, b1, w2, b2 = params                       # HWIO weights, (C,) biases
    N, Cin, H, W = pred_nchw.shape
    C1, C2 = w1.shape[-1], w2.shape[-1]
    HW = H * W

    # Pad every channel dim to a common multiple of the sublane pack for
    # mxu_dtype (16 for bf16, 8 for f32) so the tap stores into the patches
    # scratch stay tile-aligned and one scratch serves both conv layers.
    pack = 8 * (4 // jnp.dtype(mxu_dtype).itemsize)
    Cpad = _round_up(max(Cin, C1, C2), pack)

    # Match PyTorch's real_feature.detach().
    target_nchw = lax.stop_gradient(target_nchw)

    if batch_block is None:
        batch_block = _pick_batch_block(N)
    assert N % batch_block == 0
    nb = N // batch_block
    L = batch_block * 2 * HW

    # (N,C,H,W) x2 -> (nb, Cpad, L): flat pixels on the 128-lane axis, lane
    # order per block = [b0 pred | b0 targ | b1 pred | ...].  These reshapes/
    # transposes touch tiny HBM arrays once, off the kernel's critical path.
    both = jnp.stack([pred_nchw, target_nchw], axis=1)            # (N,2,C,H,W)
    both = both.reshape(N, 2, Cin, HW).astype(jnp.float32)
    both = jnp.transpose(both, (0, 2, 1, 3))                      # (N,C,2,HW)
    both = both.reshape(nb, batch_block, Cin, 2 * HW)
    both = jnp.transpose(both, (0, 2, 1, 3)).reshape(nb, Cin, L)
    both = jnp.pad(both, ((0, 0), (0, Cpad - Cin), (0, 0)))       # f32

    # im2col weight layout: (Cpad, 9*Cpad), K ordered (dy, dx, cin); padded
    # in/out channels carry zero weights + zero bias -> ReLU output 0, so the
    # padding is exactly neutral (including in the final MSE sum).
    def to_im2col(w):
        kh, kw, ci, co = w.shape
        w = jnp.pad(w, ((0, 0), (0, 0), (0, Cpad - ci), (0, Cpad - co)))
        return jnp.transpose(w, (3, 0, 1, 2)).reshape(Cpad, 9 * Cpad).astype(mxu_dtype)

    def to_bias(b):
        return jnp.pad(b, (0, Cpad - b.shape[0])).reshape(Cpad, 1).astype(jnp.float32)

    w1k, w2k = to_im2col(w1), to_im2col(w2)
    b1k, b2k = to_bias(b1), to_bias(b2)

    masks = _tap_and_seg_masks(H, W, 2 * batch_block, jnp.float32)   # (10, L)

    kernel = functools.partial(
        _content_loss_kernel, H=H, W=W,
        inv_total=1.0 / float(N * HW * C2), mxu_dtype=mxu_dtype)

    partials = pl.pallas_call(
        kernel,
        out_shape=jax.ShapeDtypeStruct((nb, 1, 1), jnp.float32),
        grid=(nb,),
        in_specs=[
            pl.BlockSpec((None, Cpad, L), lambda n: (n, 0, 0)),
            pl.BlockSpec((10, L), lambda n: (0, 0)),
            pl.BlockSpec((Cpad, 9 * Cpad), lambda n: (0, 0)),
            pl.BlockSpec((Cpad, 1), lambda n: (0, 0)),
            pl.BlockSpec((Cpad, 9 * Cpad), lambda n: (0, 0)),
            pl.BlockSpec((Cpad, 1), lambda n: (0, 0)),
        ],
        out_specs=pl.BlockSpec((None, 1, 1), lambda n: (n, 0, 0)),
        scratch_shapes=[pltpu.VMEM((9 * Cpad, L), mxu_dtype)],
        compiler_params=pltpu.CompilerParams(
            dimension_semantics=("parallel",)),    # batch blocks shard across TCs
    )(both, masks, w1k, b1k, w2k, b2k)

    return jnp.sum(partials)


# ---------------------------------------------------------------------------
# synthetic frozen "PerceptionNet" params + pure-JAX reference
# ---------------------------------------------------------------------------
def init_perception_params(key, cin=3, c1=8, c2=8):
    k1, k2, k3, k4 = jax.random.split(key, 4)
    w1 = 0.1 * jax.random.normal(k1, (3, 3, cin, c1), jnp.float32)
    b1 = 0.05 * jax.random.normal(k2, (c1,), jnp.float32)
    w2 = 0.1 * jax.random.normal(k3, (3, 3, c1, c2), jnp.float32)
    b2 = 0.05 * jax.random.normal(k4, (c2,), jnp.float32)
    return (w1, b1, w2, b2)


def _conv_ref(x, w, b):
    y = lax.conv_general_dilated(
        x, w, window_strides=(1, 1), padding="SAME",
        dimension_numbers=("NHWC", "HWIO", "NHWC"),
        precision=lax.Precision.HIGHEST)
    return jnp.maximum(y + b, 0.0)


def _content_loss_ref(pred_nchw, target_nchw, params):
    w1, b1, w2, b2 = params

    def feat(x):
        x = jnp.transpose(x, (0, 2, 3, 1))
        return _conv_ref(_conv_ref(x, w1, b1), w2, b2)

    f, r = feat(pred_nchw), feat(target_nchw)
    return jnp.mean((f - r) ** 2)


if __name__ == "__main__":
    key = jax.random.PRNGKey(0)
    kp, kt, kw = jax.random.split(key, 3)

    # NCHW inputs, matching the PyTorch module's convention.
    pred = jax.random.normal(kp, (2, 3, 16, 16), jnp.float32)
    target = jax.random.normal(kt, (2, 3, 16, 16), jnp.float32)
    params = init_perception_params(kw)

    ref = _content_loss_ref(pred, target, params)

    # Default path: bf16 MXU operands, f32 accumulation.
    loss_bf16 = jax.jit(content_loss)(pred, target, params)
    jax.block_until_ready(loss_bf16)
    assert jnp.allclose(loss_bf16, ref, rtol=2e-2, atol=1e-4), \
        (float(loss_bf16), float(ref))

    # f32 MXU path: tight check of the roll/mask/im2col structure.
    loss_f32 = jax.jit(
        functools.partial(content_loss, mxu_dtype=jnp.float32))(pred, target, params)
    jax.block_until_ready(loss_f32)
    assert jnp.allclose(loss_f32, ref, rtol=1e-3, atol=1e-5), \
        (float(loss_f32), float(ref))

    print("KERNEL_OK")
</pallas_src>

<mosaic_0001>
module attributes {stable_mosaic.version = 11 : i64} {
  func.func @_content_loss_kernel(%arg0: i32, %arg1: memref<1x16x512xf32, #tpu.memory_space<vmem>>, %arg2: memref<10x512xf32, #tpu.memory_space<vmem>>, %arg3: memref<16x144xbf16, #tpu.memory_space<vmem>>, %arg4: memref<16x1xf32, #tpu.memory_space<vmem>>, %arg5: memref<16x144xbf16, #tpu.memory_space<vmem>>, %arg6: memref<16x1xf32, #tpu.memory_space<vmem>>, %arg7: memref<1x1x1xf32, #tpu.memory_space<vmem>>, %arg8: memref<144x512xbf16, #tpu.memory_space<vmem>>) attributes {dimension_semantics = [#tpu.dimension_semantics<parallel>], iteration_bounds = array<i64: 2>, scalar_prefetch = 0 : i64, scratch_operands = 1 : i64, tpu.core_type = #tpu.core_type<tc>, window_params = [{transform_indices = @transform_0, window_bounds = array<i64: 1, 16, 512>}, {pipeline_mode = #tpu.pipeline_mode<synchronous>, transform_indices = @transform_1, window_bounds = array<i64: 10, 512>}, {pipeline_mode = #tpu.pipeline_mode<synchronous>, transform_indices = @transform_2, window_bounds = array<i64: 16, 144>}, {pipeline_mode = #tpu.pipeline_mode<synchronous>, transform_indices = @transform_3, window_bounds = array<i64: 16, 1>}, {pipeline_mode = #tpu.pipeline_mode<synchronous>, transform_indices = @transform_4, window_bounds = array<i64: 16, 144>}, {pipeline_mode = #tpu.pipeline_mode<synchronous>, transform_indices = @transform_5, window_bounds = array<i64: 16, 1>}, {transform_indices = @transform_6, window_bounds = array<i64: 1, 1, 1>}]} {
    %c0 = arith.constant 0 : index
    %c0_0 = arith.constant 0 : index
    %c0_1 = arith.constant 0 : index
    %0 = vector.load %arg1[%c0, %c0_0, %c0_1] : memref<1x16x512xf32, #tpu.memory_space<vmem>>, vector<1x16x512xf32>
    %1 = vector.shape_cast %0 : vector<1x16x512xf32> to vector<16x512xf32>
    %c0_2 = arith.constant 0 : index
    %c0_3 = arith.constant 0 : index
    %2 = vector.load %arg2[%c0_2, %c0_3] : memref<10x512xf32, #tpu.memory_space<vmem>>, vector<10x512xf32>
    %c17_i32 = arith.constant 17 : i32
    %3 = tpu.dynamic_rotate %1 by %c17_i32 dim 1 : vector<16x512xf32>, i32 -> vector<16x512xf32>
    %4 = vector.extract_strided_slice %2 {offsets = [0, 0], sizes = [1, 512], strides = [1, 1]} : vector<10x512xf32> to vector<1x512xf32>
    %5 = vector.broadcast %4 : vector<1x512xf32> to vector<16x512xf32>
    %6 = arith.mulf %5, %3 : vector<16x512xf32>
    %7 = arith.truncf %6 : vector<16x512xf32> to vector<16x512xbf16>
    %c0_4 = arith.constant 0 : index
    %c0_5 = arith.constant 0 : index
    %8 = vector.load %arg8[%c0_4, %c0_5] : memref<144x512xbf16, #tpu.memory_space<vmem>>, vector<16x512xbf16>
    tpu.vector_store %arg8[%c0_4, %c0_5], %7 {strides = array<i32>} : memref<144x512xbf16, #tpu.memory_space<vmem>>, vector<16x512xbf16>,
    %c16_i32 = arith.constant 16 : i32
    %9 = tpu.dynamic_rotate %1 by %c16_i32 dim 1 : vector<16x512xf32>, i32 -> vector<16x512xf32>
    %10 = vector.extract_strided_slice %2 {offsets = [1, 0], sizes = [1, 512], strides = [1, 1]} : vector<10x512xf32> to vector<1x512xf32>
    %11 = vector.broadcast %10 : vector<1x512xf32> to vector<16x512xf32>
    %12 = arith.mulf %11, %9 : vector<16x512xf32>
    %13 = arith.truncf %12 : vector<16x512xf32> to vector<16x512xbf16>
    %c16 = arith.constant 16 : index
    %c0_6 = arith.constant 0 : index
    %14 = vector.load %arg8[%c16, %c0_6] : memref<144x512xbf16, #tpu.memory_space<vmem>>, vector<16x512xbf16>
    tpu.vector_store %arg8[%c16, %c0_6], %13 {strides = array<i32>} : memref<144x512xbf16, #tpu.memory_space<vmem>>, vector<16x512xbf16>,
    %c15_i32 = arith.constant 15 : i32
    %15 = tpu.dynamic_rotate %1 by %c15_i32 dim 1 : vector<16x512xf32>, i32 -> vector<16x512xf32>
    %16 = vector.extract_strided_slice %2 {offsets = [2, 0], sizes = [1, 512], strides = [1, 1]} : vector<10x512xf32> to vector<1x512xf32>
    %17 = vector.broadcast %16 : vector<1x512xf32> to vector<16x512xf32>
    %18 = arith.mulf %17, %15 : vector<16x512xf32>
    %19 = arith.truncf %18 : vector<16x512xf32> to vector<16x512xbf16>
    %c32 = arith.constant 32 : index
    %c0_7 = arith.constant 0 : index
    %20 = vector.load %arg8[%c32, %c0_7] : memref<144x512xbf16, #tpu.memory_space<vmem>>, vector<16x512xbf16>
    tpu.vector_store %arg8[%c32, %c0_7], %19 {strides = array<i32>} : memref<144x512xbf16, #tpu.memory_space<vmem>>, vector<16x512xbf16>,
    %c1_i32 = arith.constant 1 : i32
    %21 = tpu.dynamic_rotate %1 by %c1_i32 dim 1 : vector<16x512xf32>, i32 -> vector<16x512xf32>
    %22 = vector.extract_strided_slice %2 {offsets = [3, 0], sizes = [1, 512], strides = [1, 1]} : vector<10x512xf32> to vector<1x512xf32>
    %23 = vector.broadcast %22 : vector<1x512xf32> to vector<16x512xf32>
    %24 = arith.mulf %23, %21 : vector<16x512xf32>
    %25 = arith.truncf %24 : vector<16x512xf32> to vector<16x512xbf16>
    %c48 = arith.constant 48 : index
    %c0_8 = arith.constant 0 : index
    %26 = vector.load %arg8[%c48, %c0_8] : memref<144x512xbf16, #tpu.memory_space<vmem>>, vector<16x512xbf16>
    tpu.vector_store %arg8[%c48, %c0_8], %25 {strides = array<i32>} : memref<144x512xbf16, #tpu.memory_space<vmem>>, vector<16x512xbf16>,
    %27 = arith.truncf %1 : vector<16x512xf32> to vector<16x512xbf16>
    %c64 = arith.constant 64 : index
    %c0_9 = arith.constant 0 : index
    %28 = vector.load %arg8[%c64, %c0_9] : memref<144x512xbf16, #tpu.memory_space<vmem>>, vector<16x512xbf16>
    tpu.vector_store %arg8[%c64, %c0_9], %27 {strides = array<i32>} : memref<144x512xbf16, #tpu.memory_space<vmem>>, vector<16x512xbf16>,
    %c511_i32 = arith.constant 511 : i32
    %29 = tpu.dynamic_rotate %1 by %c511_i32 dim 1 : vector<16x512xf32>, i32 -> vector<16x512xf32>
    %30 = vector.extract_strided_slice %2 {offsets = [5, 0], sizes = [1, 512], strides = [1, 1]} : vector<10x512xf32> to vector<1x512xf32>
    %31 = vector.broadcast %30 : vector<1x512xf32> to vector<16x512xf32>
    %32 = arith.mulf %31, %29 : vector<16x512xf32>
    %33 = arith.truncf %32 : vector<16x512xf32> to vector<16x512xbf16>
    %c80 = arith.constant 80 : index
    %c0_10 = arith.constant 0 : index
    %34 = vector.load %arg8[%c80, %c0_10] : memref<144x512xbf16, #tpu.memory_space<vmem>>, vector<16x512xbf16>
    tpu.vector_store %arg8[%c80, %c0_10], %33 {strides = array<i32>} : memref<144x512xbf16, #tpu.memory_space<vmem>>, vector<16x512xbf16>,
    %c497_i32 = arith.constant 497 : i32
    %35 = tpu.dynamic_rotate %1 by %c497_i32 dim 1 : vector<16x512xf32>, i32 -> vector<16x512xf32>
    %36 = vector.extract_strided_slice %2 {offsets = [6, 0], sizes = [1, 512], strides = [1, 1]} : vector<10x512xf32> to vector<1x512xf32>
    %37 = vector.broadcast %36 : vector<1x512xf32> to vector<16x512xf32>
    %38 = arith.mulf %37, %35 : vector<16x512xf32>
    %39 = arith.truncf %38 : vector<16x512xf32> to vector<16x512xbf16>
    %c96 = arith.constant 96 : index
    %c0_11 = arith.constant 0 : index
    %40 = vector.load %arg8[%c96, %c0_11] : memref<144x512xbf16, #tpu.memory_space<vmem>>, vector<16x512xbf16>
    tpu.vector_store %arg8[%c96, %c0_11], %39 {strides = array<i32>} : memref<144x512xbf16, #tpu.memory_space<vmem>>, vector<16x512xbf16>,
    %c496_i32 = arith.constant 496 : i32
    %41 = tpu.dynamic_rotate %1 by %c496_i32 dim 1 : vector<16x512xf32>, i32 -> vector<16x512xf32>
    %42 = vector.extract_strided_slice %2 {offsets = [7, 0], sizes = [1, 512], strides = [1, 1]} : vector<10x512xf32> to vector<1x512xf32>
    %43 = vector.broadcast %42 : vector<1x512xf32> to vector<16x512xf32>
    %44 = arith.mulf %43, %41 : vector<16x512xf32>
    %45 = arith.truncf %44 : vector<16x512xf32> to vector<16x512xbf16>
    %c112 = arith.constant 112 : index
    %c0_12 = arith.constant 0 : index
    %46 = vector.load %arg8[%c112, %c0_12] : memref<144x512xbf16, #tpu.memory_space<vmem>>, vector<16x512xbf16>
    tpu.vector_store %arg8[%c112, %c0_12], %45 {strides = array<i32>} : memref<144x512xbf16, #tpu.memory_space<vmem>>, vector<16x512xbf16>,
    %c495_i32 = arith.constant 495 : i32
    %47 = tpu.dynamic_rotate %1 by %c495_i32 dim 1 : vector<16x512xf32>, i32 -> vector<16x512xf32>
    %48 = vector.extract_strided_slice %2 {offsets = [8, 0], sizes = [1, 512], strides = [1, 1]} : vector<10x512xf32> to vector<1x512xf32>
    %49 = vector.broadcast %48 : vector<1x512xf32> to vector<16x512xf32>
    %50 = arith.mulf %49, %47 : vector<16x512xf32>
    %51 = arith.truncf %50 : vector<16x512xf32> to vector<16x512xbf16>
    %c128 = arith.constant 128 : index
    %c0_13 = arith.constant 0 : index
    %52 = vector.load %arg8[%c128, %c0_13] : memref<144x512xbf16, #tpu.memory_space<vmem>>, vector<16x512xbf16>
    tpu.vector_store %arg8[%c128, %c0_13], %51 {strides = array<i32>} : memref<144x512xbf16, #tpu.memory_space<vmem>>, vector<16x512xbf16>,
    %c0_14 = arith.constant 0 : index
    %c0_15 = arith.constant 0 : index
    %53 = vector.load %arg3[%c0_14, %c0_15] : memref<16x144xbf16, #tpu.memory_space<vmem>>, vector<16x144xbf16>
    %c0_16 = arith.constant 0 : index
    %c0_17 = arith.constant 0 : index
    %54 = vector.load %arg8[%c0_16, %c0_17] : memref<144x512xbf16, #tpu.memory_space<vmem>>, vector<144x512xbf16>
    %cst = arith.constant dense<0.000000e+00> : vector<16x512xf32>
    %55 = tpu.matmul %53, %54, %cst {dimension_numbers = #tpu.dot_dimension_numbers<[1], [0], [0], [1], [0, 0, 1, 1], [], []>} : vector<16x144xbf16>, vector<144x512xbf16>, vector<16x512xf32> -> vector<16x512xf32>
    %c0_18 = arith.constant 0 : index
    %c0_19 = arith.constant 0 : index
    %56 = vector.load %arg4[%c0_18, %c0_19] : memref<16x1xf32, #tpu.memory_space<vmem>>, vector<16x1xf32>
    %57 = vector.broadcast %56 : vector<16x1xf32> to vector<16x512xf32>
    %58 = arith.addf %55, %57 : vector<16x512xf32>
    %cst_20 = arith.constant 0.000000e+00 : f32
    %59 = vector.broadcast %cst_20 : f32 to vector<16x512xf32>
    %60 = arith.maximumf %58, %59 : vector<16x512xf32>
    %c17_i32_21 = arith.constant 17 : i32
    %61 = tpu.dynamic_rotate %60 by %c17_i32_21 dim 1 : vector<16x512xf32>, i32 -> vector<16x512xf32>
    %62 = vector.extract_strided_slice %2 {offsets = [0, 0], sizes = [1, 512], strides = [1, 1]} : vector<10x512xf32> to vector<1x512xf32>
    %63 = vector.broadcast %62 : vector<1x512xf32> to vector<16x512xf32>
    %64 = arith.mulf %63, %61 : vector<16x512xf32>
    %65 = arith.truncf %64 : vector<16x512xf32> to vector<16x512xbf16>
    %c0_22 = arith.constant 0 : index
    %c0_23 = arith.constant 0 : index
    %66 = vector.load %arg8[%c0_22, %c0_23] : memref<144x512xbf16, #tpu.memory_space<vmem>>, vector<16x512xbf16>
    tpu.vector_store %arg8[%c0_22, %c0_23], %65 {strides = array<i32>} : memref<144x512xbf16, #tpu.memory_space<vmem>>, vector<16x512xbf16>,
    %c16_i32_24 = arith.constant 16 : i32
    %67 = tpu.dynamic_rotate %60 by %c16_i32_24 dim 1 : vector<16x512xf32>, i32 -> vector<16x512xf32>
    %68 = vector.extract_strided_slice %2 {offsets = [1, 0], sizes = [1, 512], strides = [1, 1]} : vector<10x512xf32> to vector<1x512xf32>
    %69 = vector.broadcast %68 : vector<1x512xf32> to vector<16x512xf32>
    %70 = arith.mulf %69, %67 : vector<16x512xf32>
    %71 = arith.truncf %70 : vector<16x512xf32> to vector<16x512xbf16>
    %c16_25 = arith.constant 16 : index
    %c0_26 = arith.constant 0 : index
    %72 = vector.load %arg8[%c16_25, %c0_26] : memref<144x512xbf16, #tpu.memory_space<vmem>>, vector<16x512xbf16>
    tpu.vector_store %arg8[%c16_25, %c0_26], %71 {strides = array<i32>} : memref<144x512xbf16, #tpu.memory_space<vmem>>, vector<16x512xbf16>,
    %c15_i32_27 = arith.constant 15 : i32
    %73 = tpu.dynamic_rotate %60 by %c15_i32_27 dim 1 : vector<16x512xf32>, i32 -> vector<16x512xf32>
    %74 = vector.extract_strided_slice %2 {offsets = [2, 0], sizes = [1, 512], strides = [1, 1]} : vector<10x512xf32> to vector<1x512xf32>
    %75 = vector.broadcast %74 : vector<1x512xf32> to vector<16x512xf32>
    %76 = arith.mulf %75, %73 : vector<16x512xf32>
    %77 = arith.truncf %76 : vector<16x512xf32> to vector<16x512xbf16>
    %c32_28 = arith.constant 32 : index
    %c0_29 = arith.constant 0 : index
    %78 = vector.load %arg8[%c32_28, %c0_29] : memref<144x512xbf16, #tpu.memory_space<vmem>>, vector<16x512xbf16>
    tpu.vector_store %arg8[%c32_28, %c0_29], %77 {strides = array<i32>} : memref<144x512xbf16, #tpu.memory_space<vmem>>, vector<16x512xbf16>,
    %c1_i32_30 = arith.constant 1 : i32
    %79 = tpu.dynamic_rotate %60 by %c1_i32_30 dim 1 : vector<16x512xf32>, i32 -> vector<16x512xf32>
    %80 = vector.extract_strided_slice %2 {offsets = [3, 0], sizes = [1, 512], strides = [1, 1]} : vector<10x512xf32> to vector<1x512xf32>
    %81 = vector.broadcast %80 : vector<1x512xf32> to vector<16x512xf32>
    %82 = arith.mulf %81, %79 : vector<16x512xf32>
    %83 = arith.truncf %82 : vector<16x512xf32> to vector<16x512xbf16>
    %c48_31 = arith.constant 48 : index
    %c0_32 = arith.constant 0 : index
    %84 = vector.load %arg8[%c48_31, %c0_32] : memref<144x512xbf16, #tpu.memory_space<vmem>>, vector<16x512xbf16>
    tpu.vector_store %arg8[%c48_31, %c0_32], %83 {strides = array<i32>} : memref<144x512xbf16, #tpu.memory_space<vmem>>, vector<16x512xbf16>,
    %85 = arith.truncf %60 : vector<16x512xf32> to vector<16x512xbf16>
    %c64_33 = arith.constant 64 : index
    %c0_34 = arith.constant 0 : index
    %86 = vector.load %arg8[%c64_33, %c0_34] : memref<144x512xbf16, #tpu.memory_space<vmem>>, vector<16x512xbf16>
    tpu.vector_store %arg8[%c64_33, %c0_34], %85 {strides = array<i32>} : memref<144x512xbf16, #tpu.memory_space<vmem>>, vector<16x512xbf16>,
    %c511_i32_35 = arith.constant 511 : i32
    %87 = tpu.dynamic_rotate %60 by %c511_i32_35 dim 1 : vector<16x512xf32>, i32 -> vector<16x512xf32>
    %88 = vector.extract_strided_slice %2 {offsets = [5, 0], sizes = [1, 512], strides = [1, 1]} : vector<10x512xf32> to vector<1x512xf32>
    %89 = vector.broadcast %88 : vector<1x512xf32> to vector<16x512xf32>
    %90 = arith.mulf %89, %87 : vector<16x512xf32>
    %91 = arith.truncf %90 : vector<16x512xf32> to vector<16x512xbf16>
    %c80_36 = arith.constant 80 : index
    %c0_37 = arith.constant 0 : index
    %92 = vector.load %arg8[%c80_36, %c0_37] : memref<144x512xbf16, #tpu.memory_space<vmem>>, vector<16x512xbf16>
    tpu.vector_store %arg8[%c80_36, %c0_37], %91 {strides = array<i32>} : memref<144x512xbf16, #tpu.memory_space<vmem>>, vector<16x512xbf16>,
    %c497_i32_38 = arith.constant 497 : i32
    %93 = tpu.dynamic_rotate %60 by %c497_i32_38 dim 1 : vector<16x512xf32>, i32 -> vector<16x512xf32>
    %94 = vector.extract_strided_slice %2 {offsets = [6, 0], sizes = [1, 512], strides = [1, 1]} : vector<10x512xf32> to vector<1x512xf32>
    %95 = vector.broadcast %94 : vector<1x512xf32> to vector<16x512xf32>
    %96 = arith.mulf %95, %93 : vector<16x512xf32>
    %97 = arith.truncf %96 : vector<16x512xf32> to vector<16x512xbf16>
    %c96_39 = arith.constant 96 : index
    %c0_40 = arith.constant 0 : index
    %98 = vector.load %arg8[%c96_39, %c0_40] : memref<144x512xbf16, #tpu.memory_space<vmem>>, vector<16x512xbf16>
    tpu.vector_store %arg8[%c96_39, %c0_40], %97 {strides = array<i32>} : memref<144x512xbf16, #tpu.memory_space<vmem>>, vector<16x512xbf16>,
    %c496_i32_41 = arith.constant 496 : i32
    %99 = tpu.dynamic_rotate %60 by %c496_i32_41 dim 1 : vector<16x512xf32>, i32 -> vector<16x512xf32>
    %100 = vector.extract_strided_slice %2 {offsets = [7, 0], sizes = [1, 512], strides = [1, 1]} : vector<10x512xf32> to vector<1x512xf32>
    %101 = vector.broadcast %100 : vector<1x512xf32> to vector<16x512xf32>
    %102 = arith.mulf %101, %99 : vector<16x512xf32>
    %103 = arith.truncf %102 : vector<16x512xf32> to vector<16x512xbf16>
    %c112_42 = arith.constant 112 : index
    %c0_43 = arith.constant 0 : index
    %104 = vector.load %arg8[%c112_42, %c0_43] : memref<144x512xbf16, #tpu.memory_space<vmem>>, vector<16x512xbf16>
    tpu.vector_store %arg8[%c112_42, %c0_43], %103 {strides = array<i32>} : memref<144x512xbf16, #tpu.memory_space<vmem>>, vector<16x512xbf16>,
    %c495_i32_44 = arith.constant 495 : i32
    %105 = tpu.dynamic_rotate %60 by %c495_i32_44 dim 1 : vector<16x512xf32>, i32 -> vector<16x512xf32>
    %106 = vector.extract_strided_slice %2 {offsets = [8, 0], sizes = [1, 512], strides = [1, 1]} : vector<10x512xf32> to vector<1x512xf32>
    %107 = vector.broadcast %106 : vector<1x512xf32> to vector<16x512xf32>
    %108 = arith.mulf %107, %105 : vector<16x512xf32>
    %109 = arith.truncf %108 : vector<16x512xf32> to vector<16x512xbf16>
    %c128_45 = arith.constant 128 : index
    %c0_46 = arith.constant 0 : index
    %110 = vector.load %arg8[%c128_45, %c0_46] : memref<144x512xbf16, #tpu.memory_space<vmem>>, vector<16x512xbf16>
    tpu.vector_store %arg8[%c128_45, %c0_46], %109 {strides = array<i32>} : memref<144x512xbf16, #tpu.memory_space<vmem>>, vector<16x512xbf16>,
    %c0_47 = arith.constant 0 : index
    %c0_48 = arith.constant 0 : index
    %111 = vector.load %arg5[%c0_47, %c0_48] : memref<16x144xbf16, #tpu.memory_space<vmem>>, vector<16x144xbf16>
    %c0_49 = arith.constant 0 : index
    %c0_50 = arith.constant 0 : index
    %112 = vector.load %arg8[%c0_49, %c0_50] : memref<144x512xbf16, #tpu.memory_space<vmem>>, vector<144x512xbf16>
    %cst_51 = arith.constant dense<0.000000e+00> : vector<16x512xf32>
    %113 = tpu.matmul %111, %112, %cst_51 {dimension_numbers = #tpu.dot_dimension_numbers<[1], [0], [0], [1], [0, 0, 1, 1], [], []>} : vector<16x144xbf16>, vector<144x512xbf16>, vector<16x512xf32> -> vector<16x512xf32>
    %c0_52 = arith.constant 0 : index
    %c0_53 = arith.constant 0 : index
    %114 = vector.load %arg6[%c0_52, %c0_53] : memref<16x1xf32, #tpu.memory_space<vmem>>, vector<16x1xf32>
    %115 = vector.broadcast %114 : vector<16x1xf32> to vector<16x512xf32>
    %116 = arith.addf %113, %115 : vector<16x512xf32>
    %cst_54 = arith.constant 0.000000e+00 : f32
    %117 = vector.broadcast %cst_54 : f32 to vector<16x512xf32>
    %118 = arith.maximumf %116, %117 : vector<16x512xf32>
    %c256_i32 = arith.constant 256 : i32
    %119 = tpu.dynamic_rotate %118 by %c256_i32 dim 1 : vector<16x512xf32>, i32 -> vector<16x512xf32>
    %120 = arith.subf %118, %119 : vector<16x512xf32>
    %121 = vector.extract_strided_slice %2 {offsets = [9, 0], sizes = [1, 512], strides = [1, 1]} : vector<10x512xf32> to vector<1x512xf32>
    %122 = vector.broadcast %121 : vector<1x512xf32> to vector<16x512xf32>
    %123 = arith.mulf %120, %122 : vector<16x512xf32>
    %124 = arith.mulf %123, %123 : vector<16x512xf32>
    %125 = vector.shape_cast %124 : vector<16x512xf32> to vector<1x16x512xf32>
    %cst_55 = arith.constant dense<0.000000e+00> : vector<1xf32>
    %126 = vector.multi_reduction <add>, %125, %cst_55 [1, 2] : vector<1x16x512xf32> to vector<1xf32>
    %127 = vector.shape_cast %126 : vector<1xf32> to vector<1x1x1xf32>
    %128 = vector.extract %127[0, 0, 0] : f32 from vector<1x1x1xf32>
    %129 = vector.broadcast %128 : f32 to vector<1x1xf32>
    %cst_56 = arith.constant 2.44140625E-4 : f32
    %130 = vector.broadcast %cst_56 : f32 to vector<1x1xf32>
    %131 = arith.mulf %129, %130 : vector<1x1xf32>
    %c0_57 = arith.constant 0 : index
    %c0_58 = arith.constant 0 : index
    %c0_59 = arith.constant 0 : index
    %132 = vector.load %arg7[%c0_57, %c0_58, %c0_59] : memref<1x1x1xf32, #tpu.memory_space<vmem>>, vector<1x1x1xf32>
    %133 = vector.shape_cast %132 : vector<1x1x1xf32> to vector<1x1xf32>
    %134 = vector.shape_cast %131 : vector<1x1xf32> to vector<1x1x1xf32>
    tpu.vector_store %arg7[%c0_57, %c0_58, %c0_59], %134 {strides = array<i32>} : memref<1x1x1xf32, #tpu.memory_space<vmem>>, vector<1x1x1xf32>,
    return
  }
  func.func @transform_0(%arg0: i32) -> (i32, i32, i32) {
    %c0_i32 = arith.constant 0 : i32
    %c0_i32_0 = arith.constant 0 : i32
    %c0_i32_1 = arith.constant 0 : i32
    return %arg0, %c0_i32, %c0_i32_0 : i32, i32, i32
  }
  func.func @transform_1(%arg0: i32) -> (i32, i32) {
    %c0_i32 = arith.constant 0 : i32
    %c0_i32_0 = arith.constant 0 : i32
    %c0_i32_1 = arith.constant 0 : i32
    return %c0_i32, %c0_i32_0 : i32, i32
  }
  func.func @transform_2(%arg0: i32) -> (i32, i32) {
    %c0_i32 = arith.constant 0 : i32
    %c0_i32_0 = arith.constant 0 : i32
    %c0_i32_1 = arith.constant 0 : i32
    return %c0_i32, %c0_i32_0 : i32, i32
  }
  func.func @transform_3(%arg0: i32) -> (i32, i32) {
    %c0_i32 = arith.constant 0 : i32
    %c0_i32_0 = arith.constant 0 : i32
    %c0_i32_1 = arith.constant 0 : i32
    return %c0_i32, %c0_i32_0 : i32, i32
  }
  func.func @transform_4(%arg0: i32) -> (i32, i32) {
    %c0_i32 = arith.constant 0 : i32
    %c0_i32_0 = arith.constant 0 : i32
    %c0_i32_1 = arith.constant 0 : i32
    return %c0_i32, %c0_i32_0 : i32, i32
  }
  func.func @transform_5(%arg0: i32) -> (i32, i32) {
    %c0_i32 = arith.constant 0 : i32
    %c0_i32_0 = arith.constant 0 : i32
    %c0_i32_1 = arith.constant 0 : i32
    return %c0_i32, %c0_i32_0 : i32, i32
  }
  func.func @transform_6(%arg0: i32) -> (i32, i32, i32) {
    %c0_i32 = arith.constant 0 : i32
    %c0_i32_0 = arith.constant 0 : i32
    %c0_i32_1 = arith.constant 0 : i32
    return %arg0, %c0_i32, %c0_i32_0 : i32, i32, i32
  }
}

</mosaic_0001>

<llo_original>
// kernel: content_loss.1
$region0: #{content_loss.1}
  #allocation0 [shape = 'u32[]', space=smem, size = 0x4, offset = 0x4, fixed_abs, tag = 'smem constant byte address 0x4 - core index']
  #allocation1 [shape = 'u32[144,128]{1,0:T(1,128)}', space=vmem, size = 0x12000, scoped, tag = 'internal scratch']
  #allocation2 [shape = 'bf16[144,512]{1,0:T(8,128)(2,1)}', space=vmem, size = 0x24000, scoped, tag = 'scratch operand']
  %s0 = inlined_call_operand.vmem [shape: f32[2,16,512], index: 0, kind: input, shape index: {}]
  %s1 = inlined_call_operand.vmem [shape: f32[10,512], index: 1, kind: input, shape index: {}]
  %s2 = inlined_call_operand.vmem [shape: bf16[16,144], index: 2, kind: input, shape index: {}]
  %s3 = inlined_call_operand.vmem [shape: f32[16,1], index: 3, kind: input, shape index: {}]
  %s4 = inlined_call_operand.vmem [shape: bf16[16,144], index: 4, kind: input, shape index: {}]
  %s5 = inlined_call_operand.vmem [shape: f32[16,1], index: 5, kind: input, shape index: {}]
  %s6 = inlined_call_operand.vmem [shape: f32[2,1,1], index: 6, kind: output, shape index: {}]
  %s7 = sld [smem:[#allocation0]]
  $region57: #{content_loss.1} parent=0
    _
  %s9 = ssub.s32 1, %s7
  %s10 = scalar_select 0, %s9, %s7
  loop: start=0, step=1, limit=4
  $region2: #{content_loss.1} parent=0 // loop_pre_header
    _
  $region3: #{content_loss.1} parent=0 // loop_header
    %s12 = sphi 0, %s16
    %p13 = scmp.ge.s32.totalorder %s12, 4
    %s22 = sphi 0, %s24
    %s25 = sphi 0, %s22
    %s26 = sphi 0, %s25
    %s42 = sphi 0, %s26
    %s46 = sphi 0, %s46
    %s48 = sphi 0, %s46
    %s49 = sphi 0, %s48
    %s63 = sphi 0, %s49
    %s67 = sphi 0, %s67
    %s69 = sphi 0, %s67
    %s70 = sphi 0, %s69
    %s84 = sphi 0, %s70
    %s88 = sphi 0, %s88
    %s90 = sphi 0, %s88
    %s91 = sphi 0, %s90
    %s105 = sphi 0, %s91
    %s109 = sphi 0, %s109
    %s111 = sphi 0, %s109
    %s112 = sphi 0, %s111
    %s126 = sphi 0, %s112
    %s130 = sphi 0, %s130
    %s132 = sphi 0, %s130
    %s133 = sphi 0, %s132
    %s147 = sphi 0, %s133
    %s153 = sphi 0, %s155
    %s156 = sphi 0, %s153
    %s157 = sphi 0, %s156
    %s173 = sphi 0, %s157
  $region4: #{content_loss.1} parent=0 // loop_header_branch
    %15 = sbr.rel (%p13) target = $region8
  $region5: #{content_loss.1} parent=0 // loop_body
    %s17 = ssub.s32 %s12, 1
    %s18 = ssub.s32 %s12, 2
    %s19 = sadd.s32 %s12, 1
    %s20 = ssub.s32 %s12, %s19
    %p21 = scmp.eq.s32.totalorder %s20, 0
    %s23 = sadd.s32 %s22, 1
    %s24 = scalar_select %p21, %s22, %s23
    %p27 = pneg %p21
    %p28 = scmp.eq.s32.totalorder %s12, 1
    %p29 = por %p27, %p28
    %p30 = scmp.ne.s32.totalorder %s22, %s25
    %p31 = scmp.eq.s32.totalorder %s12, 0
    %p32 = por %p30, %p31
    %p33 = scmp.ne.s32.totalorder %s22, %s25
    %p34 = scmp.eq.s32.totalorder %s17, 1
    %p35 = por %p33, %p34
    %p36 = scmp.ne.s32.totalorder %s25, %s26
    %p37 = scmp.eq.s32.totalorder %s17, 0
    %p38 = por %p36, %p37
    %p39 = scmp.ne.s32.totalorder %s25, %s26
    %p40 = scmp.eq.s32.totalorder %s18, 1
    %p41 = por %p39, %p40
    %p43 = scmp.ne.s32.totalorder %s26, %s42
    %p44 = scmp.eq.s32.totalorder %s18, 0
    %p45 = por %p43, %p44
    %s47 = sadd.s32 %s46, 1
    %p50 = scmp.eq.s32.totalorder %s12, 1
    %p51 = scmp.ne.s32.totalorder %s46, %s48
    %p52 = scmp.eq.s32.totalorder %s12, 0
    %p53 = por %p51, %p52
    %p54 = scmp.ne.s32.totalorder %s46, %s48
    %p55 = scmp.eq.s32.totalorder %s17, 1
    %p56 = por %p54, %p55
    %p57 = scmp.ne.s32.totalorder %s48, %s49
    %p58 = scmp.eq.s32.totalorder %s17, 0
    %p59 = por %p57, %p58
    %p60 = scmp.ne.s32.totalorder %s48, %s49
    %p61 = scmp.eq.s32.totalorder %s18, 1
    %p62 = por %p60, %p61
    %p64 = scmp.ne.s32.totalorder %s49, %s63
    %p65 = scmp.eq.s32.totalorder %s18, 0
    %p66 = por %p64, %p65
    %s68 = sadd.s32 %s67, 1
    %p71 = scmp.eq.s32.totalorder %s12, 1
    %p72 = scmp.ne.s32.totalorder %s67, %s69
    %p73 = scmp.eq.s32.totalorder %s12, 0
    %p74 = por %p72, %p73
    %p75 = scmp.ne.s32.totalorder %s67, %s69
    %p76 = scmp.eq.s32.totalorder %s17, 1
    %p77 = por %p75, %p76
    %p78 = scmp.ne.s32.totalorder %s69, %s70
    %p79 = scmp.eq.s32.totalorder %s17, 0
    %p80 = por %p78, %p79
    %p81 = scmp.ne.s32.totalorder %s69, %s70
    %p82 = scmp.eq.s32.totalorder %s18, 1
    %p83 = por %p81, %p82
    %p85 = scmp.ne.s32.totalorder %s70, %s84
    %p86 = scmp.eq.s32.totalorder %s18, 0
    %p87 = por %p85, %p86
    %s89 = sadd.s32 %s88, 1
    %p92 = scmp.eq.s32.totalorder %s12, 1
    %p93 = scmp.ne.s32.totalorder %s88, %s90
    %p94 = scmp.eq.s32.totalorder %s12, 0
    %p95 = por %p93, %p94
    %p96 = scmp.ne.s32.totalorder %s88, %s90
    %p97 = scmp.eq.s32.totalorder %s17, 1
    %p98 = por %p96, %p97
    %p99 = scmp.ne.s32.totalorder %s90, %s91
    %p100 = scmp.eq.s32.totalorder %s17, 0
    %p101 = por %p99, %p100
    %p102 = scmp.ne.s32.totalorder %s90, %s91
    %p103 = scmp.eq.s32.totalorder %s18, 1
    %p104 = por %p102, %p103
    %p106 = scmp.ne.s32.totalorder %s91, %s105
    %p107 = scmp.eq.s32.totalorder %s18, 0
    %p108 = por %p106, %p107
    %s110 = sadd.s32 %s109, 1
    %p113 = scmp.eq.s32.totalorder %s12, 1
    %p114 = scmp.ne.s32.totalorder %s109, %s111
    %p115 = scmp.eq.s32.totalorder %s12, 0
    %p116 = por %p114, %p115
    %p117 = scmp.ne.s32.totalorder %s109, %s111
    %p118 = scmp.eq.s32.totalorder %s17, 1
    %p119 = por %p117, %p118
    %p120 = scmp.ne.s32.totalorder %s111, %s112
    %p121 = scmp.eq.s32.totalorder %s17, 0
    %p122 = por %p120, %p121
    %p123 = scmp.ne.s32.totalorder %s111, %s112
    %p124 = scmp.eq.s32.totalorder %s18, 1
    %p125 = por %p123, %p124
    %p127 = scmp.ne.s32.totalorder %s112, %s126
    %p128 = scmp.eq.s32.totalorder %s18, 0
    %p129 = por %p127, %p128
    %s131 = sadd.s32 %s130, 1
    %p134 = scmp.eq.s32.totalorder %s12, 1
    %p135 = scmp.ne.s32.totalorder %s130, %s132
    %p136 = scmp.eq.s32.totalorder %s12, 0
    %p137 = por %p135, %p136
    %p138 = scmp.ne.s32.totalorder %s130, %s132
    %p139 = scmp.eq.s32.totalorder %s17, 1
    %p140 = por %p138, %p139
    %p141 = scmp.ne.s32.totalorder %s132, %s133
    %p142 = scmp.eq.s32.totalorder %s17, 0
    %p143 = por %p141, %p142
    %p144 = scmp.ne.s32.totalorder %s132, %s133
    %p145 = scmp.eq.s32.totalorder %s18, 1
    %p146 = por %p144, %p145
    %p148 = scmp.ne.s32.totalorder %s133, %s147
    %p149 = scmp.eq.s32.totalorder %s18, 0
    %p150 = por %p148, %p149
    %s151 = ssub.s32 %s12, %s19
    %p152 = scmp.eq.s32.totalorder %s151, 0
    %s154 = sadd.s32 %s153, 1
    %s155 = scalar_select %p152, %s153, %s154
    %p158 = pneg %p152
    %p159 = scmp.eq.s32.totalorder %s12, 1
    %p160 = por %p158, %p159
    %p161 = scmp.ne.s32.totalorder %s153, %s156
    %p162 = scmp.eq.s32.totalorder %s12, 0
    %p163 = por %p161, %p162
    %p164 = scmp.ne.s32.totalorder %s153, %s156
    %p165 = scmp.eq.s32.totalorder %s17, 1
    %p166 = por %p164, %p165
    %p167 = scmp.ne.s32.totalorder %s156, %s157
    %p168 = scmp.eq.s32.totalorder %s17, 0
    %p169 = por %p167, %p168
    %p170 = scmp.ne.s32.totalorder %s156, %s157
    %p171 = scmp.eq.s32.totalorder %s18, 1
    %p172 = por %p170, %p171
    %p174 = scmp.ne.s32.totalorder %s157, %s173
    %p175 = scmp.eq.s32.totalorder %s18, 0
    %p176 = por %p174, %p175
    %p177 = scmp.le.s32.totalorder 1, %s12
    %p178 = scmp.lt.s32.totalorder %s12, 3
    %p179 = pnand %p177, %p178
    %p180 = pneg %p179
    // Predicated region
    $region9: #{content_loss.1} parent=5 // pred_check
      _
    $region10: #{content_loss.1} parent=5 // pred_check_branch
      %182 = sbr.rel (%p179) target = $region12
    $region11: #{content_loss.1} parent=5 // pred_region
      %s183 = ssub.s32 %s12, 1
      // Predicated region
      $region13: #{content_loss.1} parent=11 // pred_check
        %p184 = pneg %p59
      $region14: #{content_loss.1} parent=11 // pred_check_branch
        %186 = sbr.rel (%p184) target = $region16
      $region15: #{content_loss.1} parent=11 // pred_region
        _
      $region16: #{content_loss.1} parent=11 // pred_fallthru
        _
      // Predicated region
      $region17: #{content_loss.1} parent=11 // pred_check
        %p187 = pneg %p80
      $region18: #{content_loss.1} parent=11 // pred_check_branch
        %189 = sbr.rel (%p187) target = $region20
      $region19: #{content_loss.1} parent=11 // pred_region
        _
      $region20: #{content_loss.1} parent=11 // pred_fallthru
        _
      // Predicated region
      $region21: #{content_loss.1} parent=11 // pred_check
        %p190 = pneg %p101
      $region22: #{content_loss.1} parent=11 // pred_check_branch
        %192 = sbr.rel (%p190) target = $region24
      $region23: #{content_loss.1} parent=11 // pred_region
        _
      $region24: #{content_loss.1} parent=11 // pred_fallthru
        _
      // Predicated region
      $region25: #{content_loss.1} parent=11 // pred_check
        %p193 = pneg %p122
      $region26: #{content_loss.1} parent=11 // pred_check_branch
        %195 = sbr.rel (%p193) target = $region28
      $region27: #{content_loss.1} parent=11 // pred_region
        _
      $region28: #{content_loss.1} parent=11 // pred_fallthru
        _
      // Predicated region
      $region29: #{content_loss.1} parent=11 // pred_check
        %p196 = pneg %p143
      $region30: #{content_loss.1} parent=11 // pred_check_branch
        %198 = sbr.rel (%p196) target = $region32
      $region31: #{content_loss.1} parent=11 // pred_region
        _
      $region32: #{content_loss.1} parent=11 // pred_fallthru
        _
    $region12: #{content_loss.1} parent=5 // pred_fallthru
      _
    %p199 = scmp.lt.s32.totalorder %s12, 2
    // Predicated region
    $region33: #{content_loss.1} parent=5 // pred_check
      %p200 = pneg %p199
    $region34: #{content_loss.1} parent=5 // pred_check_branch
      %202 = sbr.rel (%p200) target = $region36
    $region35: #{content_loss.1} parent=5 // pred_region
      // Predicated region
      $region37: #{content_loss.1} parent=35 // pred_check
        %p203 = pneg %p32
      $region38: #{content_loss.1} parent=35 // pred_check_branch
        %205 = sbr.rel (%p203) target = $region40
      $region39: #{content_loss.1} parent=35 // pred_region
        %p206 = scmp.lt.s32.totalorder %s12, 1
        %s207 = scalar_select %p206, %s12, 1
        %s208 = smul.addr %s207, 8
        %s209 = smul.addr %s208, 8
        %s210 = scalar_lea.vmem %s0, %s209
      $region40: #{content_loss.1} parent=35 // pred_fallthru
        _
    $region36: #{content_loss.1} parent=5 // pred_fallthru
      _
    %p211 = scmp.le.s32.totalorder 1, %s12
    %p212 = scmp.lt.s32.totalorder %s12, 3
    %p213 = pnand %p211, %p212
    %p214 = pneg %p213
    // Predicated region
    $region41: #{content_loss.1} parent=5 // pred_check
      _
    $region42: #{content_loss.1} parent=5 // pred_check_branch
      %216 = sbr.rel (%p213) target = $region44
    $region43: #{content_loss.1} parent=5 // pred_region
      %s217 = ssub.s32 %s12, 1
      %p218 = scmp.lt.s32.totalorder %s17, 1
      %s219 = scalar_select %p218, %s17, 1
      %s220 = smul.addr %s219, 8
      %s221 = smul.addr %s220, 8
      %s222 = scalar_lea.vmem %s0, %s221
      %p223 = pneg %p38
      %p224 = pneg %p35
      %p225 = pneg %p59
      %p226 = pneg %p56
      %p227 = pneg %p80
      %p228 = pneg %p77
      %p229 = pneg %p101
      %p230 = pneg %p98
      %p231 = pneg %p122
      %p232 = pneg %p119
      %p233 = pneg %p143
      %p234 = pneg %p140
      %p235 = pneg %p169
      %p236 = pneg %p166
      %p237 = scmp.lt.s32.totalorder %s17, 1
      %s238 = scalar_select %p237, %s17, 1
      %s239 = scalar_lea.vmem %s6, %s238
      %p240 = scmp.lt.s32.totalorder %s17, 1
      %s241 = scalar_select %p240, %s17, 1
      %s242 = smul.addr %s241, 8
      %s243 = smul.addr %s242, 8
      %s244 = scalar_lea.vmem %s0, %s243
      %p245 = scmp.lt.s32.totalorder %s17, 1
      %s246 = scalar_select %p245, %s17, 1
      %s247 = scalar_lea.vmem %s6, %s246
      %v249 = vld [vmem:[%s244] sm:$0xff]
      %v250 = vld [vmem:[%s244 + $0x8] sm:$0xff]
      %v251 = vld [vmem:[%s244 + $0x10] sm:$0xff]
      %v252 = vld [vmem:[%s244 + $0x18] sm:$0xff]
      %v253 = vld [vmem:[%s244 + $0x20] sm:$0xff]
      %v254 = vld [vmem:[%s244 + $0x28] sm:$0xff]
      %v255 = vld [vmem:[%s244 + $0x30] sm:$0xff]
      %v256 = vld [vmem:[%s244 + $0x38] sm:$0xff]
      %v257 = vld [vmem:[%s1] sm:$0xff]
      %v258 = vld [vmem:[%s1 + $0x8] sm:$0xff]
      %v259 = vld [vmem:[%s1 + $0x10] sm:$0xff]
      %v260 = vld [vmem:[%s1 + $0x18] sm:$0xff]
      %v261 = vld [vmem:[%s1 + $0x20] sm:$0x3]
      %v262 = vld [vmem:[%s1 + $0x28] sm:$0x3]
      %v263 = vld [vmem:[%s1 + $0x30] sm:$0x3]
      %v264 = vld [vmem:[%s1 + $0x38] sm:$0x3]
      %265 = vrot.lane.b32.xlu0 %v249, 17
      %v266 = vpop.permute.xlu0 %265
      %267 = vrot.lane.b32.xlu0 %v253, 17
      %v268 = vpop.permute.xlu0 %267
      %269 = vrot.lane.b32.xlu0 %v250, 17
      %v270 = vpop.permute.xlu0 %269
      %271 = vrot.lane.b32.xlu0 %v254, 17
      %v272 = vpop.permute.xlu0 %271
      %273 = vrot.lane.b32.xlu0 %v251, 17
      %v274 = vpop.permute.xlu0 %273
      %275 = vrot.lane.b32.xlu0 %v255, 17
      %v276 = vpop.permute.xlu0 %275
      %277 = vrot.lane.b32.xlu0 %v252, 17
      %v278 = vpop.permute.xlu0 %277
      %279 = vrot.lane.b32.xlu0 %v256, 17
      %v280 = vpop.permute.xlu0 %279
      %v281 = vlaneseq
      %v282 = vand.u32 %v281, 127
      %vm283 = vcmp.lt.s32.totalorder %v282, 17
      %v284 = vsel %vm283, %v274, %v278
      %v285 = vsel %vm283, %v276, %v280
      %v286 = vsel %vm283, %v270, %v274
      %v287 = vsel %vm283, %v272, %v276
      %v288 = vsel %vm283, %v266, %v270
      %v289 = vsel %vm283, %v268, %v272
      %v290 = vsel %vm283, %v278, %v266
      %v291 = vsel %vm283, %v280, %v268
      %v292 = vlaneseq
      %v293 = vshrl.u32 %v292, 7
      %v294 = vsub.s32 0, %v293
      %v295 = vrot.slane %v257, %v294
      %v296 = vlaneseq
      %v297 = vshrl.u32 %v296, 7
      %v298 = vsub.s32 0, %v297
      %v299 = vrot.slane %v258, %v298
      %v300 = vlaneseq
      %v301 = vshrl.u32 %v300, 7
      %v302 = vsub.s32 0, %v301
      %v303 = vrot.slane %v259, %v302
      %v304 = vlaneseq
      %v305 = vshrl.u32 %v304, 7
      %v306 = vsub.s32 0, %v305
      %v307 = vrot.slane %v260, %v306
      %v308 = vmul.f32 %v295, %v290
      %v309 = vmul.f32 %v299, %v288
      %v310 = vmul.f32 %v303, %v286
      %v311 = vmul.f32 %v307, %v284
      %v312 = vmul.f32 %v295, %v291
      %v313 = vmul.f32 %v299, %v289
      %v314 = vmul.f32 %v303, %v287
      %v315 = vmul.f32 %v307, %v285
      %v316 = vpack.c.bf16 %v312, %v308
      %v317 = vpack.c.bf16 %v313, %v309
      %v318 = vpack.c.bf16 %v314, %v310
      %v319 = vpack.c.bf16 %v315, %v311
      %v324 = vunpack.c.l.b16 %v316
      %v325 = vunpack.c.l.b16 %v317
      %v326 = vunpack.c.l.b16 %v318
      %v327 = vunpack.c.l.b16 %v319
      %v328 = vunpack.c.h.b16 %v316
      %v329 = vunpack.c.h.b16 %v317
      %v330 = vunpack.c.h.b16 %v318
      %v331 = vunpack.c.h.b16 %v319
      %v332 = vpack.c.b16 %v325, %v324
      %v333 = vpack.c.b16 %v327, %v326
      %v334 = vpack.c.b16 %v329, %v328
      %v335 = vpack.c.b16 %v331, %v330
      %340 = vst [vmem:[#allocation2] sm:$0xff] %v332
      %341 = vst [vmem:[#allocation2 + $0x8] sm:$0xff] %v333
      %342 = vst [vmem:[#allocation2 + $0x10] sm:$0xff] %v334
      %343 = vst [vmem:[#allocation2 + $0x18] sm:$0xff] %v335
      %344 = vrot.lane.b32.xlu0 %v249, 16
      %v345 = vpop.permute.xlu0 %344
      %346 = vrot.lane.b32.xlu0 %v253, 16
      %v347 = vpop.permute.xlu0 %346
      %348 = vrot.lane.b32.xlu0 %v250, 16
      %v349 = vpop.permute.xlu0 %348
      %350 = vrot.lane.b32.xlu0 %v254, 16
      %v351 = vpop.permute.xlu0 %350
      %352 = vrot.lane.b32.xlu0 %v251, 16
      %v353 = vpop.permute.xlu0 %352
      %354 = vrot.lane.b32.xlu0 %v255, 16
      %v355 = vpop.permute.xlu0 %354
      %356 = vrot.lane.b32.xlu0 %v252, 16
      %v357 = vpop.permute.xlu0 %356
      %358 = vrot.lane.b32.xlu0 %v256, 16
      %v359 = vpop.permute.xlu0 %358
      %vm360 = vcmp.lt.s32.totalorder %v282, 16
      %v361 = vsel %vm360, %v353, %v357
      %v362 = vsel %vm360, %v355, %v359
      %v363 = vsel %vm360, %v349, %v353
      %v364 = vsel %vm360, %v351, %v355
      %v365 = vsel %vm360, %v345, %v349
      %v366 = vsel %vm360, %v347, %v351
      %v367 = vsel %vm360, %v357, %v345
      %v368 = vsel %vm360, %v359, %v347
      %v369 = vlaneseq
      %v370 = vshrl.u32 %v369, 7
      %v371 = vsub.s32 1, %v370
      %v372 = vrot.slane %v257, %v371
      %v373 = vlaneseq
      %v374 = vshrl.u32 %v373, 7
      %v375 = vsub.s32 1, %v374
      %v376 = vrot.slane %v258, %v375
      %v377 = vlaneseq
      %v378 = vshrl.u32 %v377, 7
      %v379 = vsub.s32 1, %v378
      %v380 = vrot.slane %v259, %v379
      %v381 = vlaneseq
      %v382 = vshrl.u32 %v381, 7
      %v383 = vsub.s32 1, %v382
      %v384 = vrot.slane %v260, %v383
      %v385 = vmul.f32 %v372, %v367
      %v386 = vmul.f32 %v376, %v365
      %v387 = vmul.f32 %v380, %v363
      %v388 = vmul.f32 %v384, %v361
      %v389 = vmul.f32 %v372, %v368
      %v390 = vmul.f32 %v376, %v366
      %v391 = vmul.f32 %v380, %v364
      %v392 = vmul.f32 %v384, %v362
      %v393 = vpack.c.bf16 %v389, %v385
      %v394 = vpack.c.bf16 %v390, %v386
      %v395 = vpack.c.bf16 %v391, %v387
      %v396 = vpack.c.bf16 %v392, %v388
      %v401 = vunpack.c.l.b16 %v393
      %v402 = vunpack.c.l.b16 %v394
      %v403 = vunpack.c.l.b16 %v395
      %v404 = vunpack.c.l.b16 %v396
      %v405 = vunpack.c.h.b16 %v393
      %v406 = vunpack.c.h.b16 %v394
      %v407 = vunpack.c.h.b16 %v395
      %v408 = vunpack.c.h.b16 %v396
      %v409 = vpack.c.b16 %v402, %v401
      %v410 = vpack.c.b16 %v404, %v403
      %v411 = vpack.c.b16 %v406, %v405
      %v412 = vpack.c.b16 %v408, %v407
      %417 = vst [vmem:[#allocation2 + $0x20] sm:$0xff] %v409
      %418 = vst [vmem:[#allocation2 + $0x28] sm:$0xff] %v410
      %419 = vst [vmem:[#allocation2 + $0x30] sm:$0xff] %v411
      %420 = vst [vmem:[#allocation2 + $0x38] sm:$0xff] %v412
      %421 = vrot.lane.b32.xlu0 %v249, 15
      %v422 = vpop.permute.xlu0 %421
      %423 = vrot.lane.b32.xlu0 %v253, 15
      %v424 = vpop.permute.xlu0 %423
      %425 = vrot.lane.b32.xlu0 %v250, 15
      %v426 = vpop.permute.xlu0 %425
      %427 = vrot.lane.b32.xlu0 %v254, 15
      %v428 = vpop.permute.xlu0 %427
      %429 = vrot.lane.b32.xlu0 %v251, 15
      %v430 = vpop.permute.xlu0 %429
      %431 = vrot.lane.b32.xlu0 %v255, 15
      %v432 = vpop.permute.xlu0 %431
      %433 = vrot.lane.b32.xlu0 %v252, 15
      %v434 = vpop.permute.xlu0 %433
      %435 = vrot.lane.b32.xlu0 %v256, 15
      %v436 = vpop.permute.xlu0 %435
      %vm437 = vcmp.lt.s32.totalorder %v282, 15
      %v438 = vsel %vm437, %v430, %v434
      %v439 = vsel %vm437, %v432, %v436
      %v440 = vsel %vm437, %v426, %v430
      %v441 = vsel %vm437, %v428, %v432
      %v442 = vsel %vm437, %v422, %v426
      %v443 = vsel %vm437, %v424, %v428
      %v444 = vsel %vm437, %v434, %v422
      %v445 = vsel %vm437, %v436, %v424
      %v446 = vlaneseq
      %v447 = vshrl.u32 %v446, 7
      %v448 = vsub.s32 2, %v447
      %v449 = vrot.slane %v257, %v448
      %v450 = vlaneseq
      %v451 = vshrl.u32 %v450, 7
      %v452 = vsub.s32 2, %v451
      %v453 = vrot.slane %v258, %v452
      %v454 = vlaneseq
      %v455 = vshrl.u32 %v454, 7
      %v456 = vsub.s32 2, %v455
      %v457 = vrot.slane %v259, %v456
      %v458 = vlaneseq
      %v459 = vshrl.u32 %v458, 7
      %v460 = vsub.s32 2, %v459
      %v461 = vrot.slane %v260, %v460
      %v462 = vmul.f32 %v449, %v444
      %v463 = vmul.f32 %v453, %v442
      %v464 = vmul.f32 %v457, %v440
      %v465 = vmul.f32 %v461, %v438
      %v466 = vmul.f32 %v449, %v445
      %v467 = vmul.f32 %v453, %v443
      %v468 = vmul.f32 %v457, %v441
      %v469 = vmul.f32 %v461, %v439
      %v470 = vpack.c.bf16 %v466, %v462
      %v471 = vpack.c.bf16 %v467, %v463
      %v472 = vpack.c.bf16 %v468, %v464
      %v473 = vpack.c.bf16 %v469, %v465
      %v478 = vunpack.c.l.b16 %v470
      %v479 = vunpack.c.l.b16 %v471
      %v480 = vunpack.c.l.b16 %v472
      %v481 = vunpack.c.l.b16 %v473
      %v482 = vunpack.c.h.b16 %v470
      %v483 = vunpack.c.h.b16 %v471
      %v484 = vunpack.c.h.b16 %v472
      %v485 = vunpack.c.h.b16 %v473
      %v486 = vpack.c.b16 %v479, %v478
      %v487 = vpack.c.b16 %v481, %v480
      %v488 = vpack.c.b16 %v483, %v482
      %v489 = vpack.c.b16 %v485, %v484
      %494 = vst [vmem:[#allocation2 + $0x40] sm:$0xff] %v486
      %495 = vst [vmem:[#allocation2 + $0x48] sm:$0xff] %v487
      %496 = vst [vmem:[#allocation2 + $0x50] sm:$0xff] %v488
      %497 = vst [vmem:[#allocation2 + $0x58] sm:$0xff] %v489
      %498 = vrot.lane.b32.xlu0 %v249, 1
      %v499 = vpop.permute.xlu0 %498
      %500 = vrot.lane.b32.xlu0 %v253, 1
      %v501 = vpop.permute.xlu0 %500
      %502 = vrot.lane.b32.xlu0 %v250, 1
      %v503 = vpop.permute.xlu0 %502
      %504 = vrot.lane.b32.xlu0 %v254, 1
      %v505 = vpop.permute.xlu0 %504
      %506 = vrot.lane.b32.xlu0 %v251, 1
      %v507 = vpop.permute.xlu0 %506
      %508 = vrot.lane.b32.xlu0 %v255, 1
      %v509 = vpop.permute.xlu0 %508
      %510 = vrot.lane.b32.xlu0 %v252, 1
      %v511 = vpop.permute.xlu0 %510
      %512 = vrot.lane.b32.xlu0 %v256, 1
      %v513 = vpop.permute.xlu0 %512
      %vm514 = vcmp.lt.s32.totalorder %v282, 1
      %v515 = vsel %vm514, %v507, %v511
      %v516 = vsel %vm514, %v509, %v513
      %v517 = vsel %vm514, %v503, %v507
      %v518 = vsel %vm514, %v505, %v509
      %v519 = vsel %vm514, %v499, %v503
      %v520 = vsel %vm514, %v501, %v505
      %v521 = vsel %vm514, %v511, %v499
      %v522 = vsel %vm514, %v513, %v501
      %v523 = vlaneseq
      %v524 = vshrl.u32 %v523, 7
      %v525 = vsub.s32 3, %v524
      %v526 = vrot.slane %v257, %v525
      %v527 = vlaneseq
      %v528 = vshrl.u32 %v527, 7
      %v529 = vsub.s32 3, %v528
      %v530 = vrot.slane %v258, %v529
      %v531 = vlaneseq
      %v532 = vshrl.u32 %v531, 7
      %v533 = vsub.s32 3, %v532
      %v534 = vrot.slane %v259, %v533
      %v535 = vlaneseq
      %v536 = vshrl.u32 %v535, 7
      %v537 = vsub.s32 3, %v536
      %v538 = vrot.slane %v260, %v537
      %v539 = vmul.f32 %v526, %v521
      %v540 = vmul.f32 %v530, %v519
      %v541 = vmul.f32 %v534, %v517
      %v542 = vmul.f32 %v538, %v515
      %v543 = vmul.f32 %v526, %v522
      %v544 = vmul.f32 %v530, %v520
      %v545 = vmul.f32 %v534, %v518
      %v546 = vmul.f32 %v538, %v516
      %v547 = vpack.c.bf16 %v543, %v539
      %v548 = vpack.c.bf16 %v544, %v540
      %v549 = vpack.c.bf16 %v545, %v541
      %v550 = vpack.c.bf16 %v546, %v542
      %v555 = vunpack.c.l.b16 %v547
      %v556 = vunpack.c.l.b16 %v548
      %v557 = vunpack.c.l.b16 %v549
      %v558 = vunpack.c.l.b16 %v550
      %v559 = vunpack.c.h.b16 %v547
      %v560 = vunpack.c.h.b16 %v548
      %v561 = vunpack.c.h.b16 %v549
      %v562 = vunpack.c.h.b16 %v550
      %v563 = vpack.c.b16 %v556, %v555
      %v564 = vpack.c.b16 %v558, %v557
      %v565 = vpack.c.b16 %v560, %v559
      %v566 = vpack.c.b16 %v562, %v561
      %571 = vst [vmem:[#allocation2 + $0x60] sm:$0xff] %v563
      %572 = vst [vmem:[#allocation2 + $0x68] sm:$0xff] %v564
      %573 = vst [vmem:[#allocation2 + $0x70] sm:$0xff] %v565
      %574 = vst [vmem:[#allocation2 + $0x78] sm:$0xff] %v566
      %v575 = vpack.c.bf16 %v253, %v249
      %v576 = vpack.c.bf16 %v254, %v250
      %v577 = vpack.c.bf16 %v255, %v251
      %v578 = vpack.c.bf16 %v256, %v252
      %v583 = vunpack.c.l.b16 %v575
      %v584 = vunpack.c.l.b16 %v576
      %v585 = vunpack.c.l.b16 %v577
      %v586 = vunpack.c.l.b16 %v578
      %v587 = vunpack.c.h.b16 %v575
      %v588 = vunpack.c.h.b16 %v576
      %v589 = vunpack.c.h.b16 %v577
      %v590 = vunpack.c.h.b16 %v578
      %v591 = vpack.c.b16 %v584, %v583
      %v592 = vpack.c.b16 %v586, %v585
      %v593 = vpack.c.b16 %v588, %v587
      %v594 = vpack.c.b16 %v590, %v589
      %599 = vst [vmem:[#allocation2 + $0x80] sm:$0xff] %v591
      %600 = vst [vmem:[#allocation2 + $0x88] sm:$0xff] %v592
      %601 = vst [vmem:[#allocation2 + $0x90] sm:$0xff] %v593
      %602 = vst [vmem:[#allocation2 + $0x98] sm:$0xff] %v594
      %603 = vrot.lane.b32.xlu0 %v249, 127
      %v604 = vpop.permute.xlu0 %603
      %605 = vrot.lane.b32.xlu0 %v253, 127
      %v606 = vpop.permute.xlu0 %605
      %607 = vrot.lane.b32.xlu0 %v250, 127
      %v608 = vpop.permute.xlu0 %607
      %609 = vrot.lane.b32.xlu0 %v254, 127
      %v610 = vpop.permute.xlu0 %609
      %611 = vrot.lane.b32.xlu0 %v251, 127
      %v612 = vpop.permute.xlu0 %611
      %613 = vrot.lane.b32.xlu0 %v255, 127
      %v614 = vpop.permute.xlu0 %613
      %615 = vrot.lane.b32.xlu0 %v252, 127
      %v616 = vpop.permute.xlu0 %615
      %617 = vrot.lane.b32.xlu0 %v256, 127
      %v618 = vpop.permute.xlu0 %617
      %vm619 = vcmp.lt.s32.totalorder %v282, 127
      %v620 = vsel %vm619, %v612, %v616
      %v621 = vsel %vm619, %v614, %v618
      %v622 = vsel %vm619, %v608, %v612
      %v623 = vsel %vm619, %v610, %v614
      %v624 = vsel %vm619, %v604, %v608
      %v625 = vsel %vm619, %v606, %v610
      %v626 = vsel %vm619, %v616, %v604
      %v627 = vsel %vm619, %v618, %v606
      %v628 = vlaneseq
      %v629 = vshrl.u32 %v628, 7
      %v630 = vsub.s32 5, %v629
      %v631 = vrot.slane %v257, %v630
      %v632 = vlaneseq
      %v633 = vshrl.u32 %v632, 7
      %v634 = vsub.s32 5, %v633
      %v635 = vrot.slane %v258, %v634
      %v636 = vlaneseq
      %v637 = vshrl.u32 %v636, 7
      %v638 = vsub.s32 5, %v637
      %v639 = vrot.slane %v259, %v638
      %v640 = vlaneseq
      %v641 = vshrl.u32 %v640, 7
      %v642 = vsub.s32 5, %v641
      %v643 = vrot.slane %v260, %v642
      %v644 = vmul.f32 %v631, %v624
      %v645 = vmul.f32 %v635, %v622
      %v646 = vmul.f32 %v639, %v620
      %v647 = vmul.f32 %v643, %v626
      %v648 = vmul.f32 %v631, %v625
      %v649 = vmul.f32 %v635, %v623
      %v650 = vmul.f32 %v639, %v621
      %v651 = vmul.f32 %v643, %v627
      %v652 = vpack.c.bf16 %v648, %v644
      %v653 = vpack.c.bf16 %v649, %v645
      %v654 = vpack.c.bf16 %v650, %v646
      %v655 = vpack.c.bf16 %v651, %v647
      %v660 = vunpack.c.l.b16 %v652
      %v661 = vunpack.c.l.b16 %v653
      %v662 = vunpack.c.l.b16 %v654
      %v663 = vunpack.c.l.b16 %v655
      %v664 = vunpack.c.h.b16 %v652
      %v665 = vunpack.c.h.b16 %v653
      %v666 = vunpack.c.h.b16 %v654
      %v667 = vunpack.c.h.b16 %v655
      %v668 = vpack.c.b16 %v661, %v660
      %v669 = vpack.c.b16 %v663, %v662
      %v670 = vpack.c.b16 %v665, %v664
      %v671 = vpack.c.b16 %v667, %v666
      %676 = vst [vmem:[#allocation2 + $0xa0] sm:$0xff] %v668
      %677 = vst [vmem:[#allocation2 + $0xa8] sm:$0xff] %v669
      %678 = vst [vmem:[#allocation2 + $0xb0] sm:$0xff] %v670
      %679 = vst [vmem:[#allocation2 + $0xb8] sm:$0xff] %v671
      %680 = vrot.lane.b32.xlu0 %v249, 113
      %v681 = vpop.permute.xlu0 %680
      %682 = vrot.lane.b32.xlu0 %v253, 113
      %v683 = vpop.permute.xlu0 %682
      %684 = vrot.lane.b32.xlu0 %v250, 113
      %v685 = vpop.permute.xlu0 %684
      %686 = vrot.lane.b32.xlu0 %v254, 113
      %v687 = vpop.permute.xlu0 %686
      %688 = vrot.lane.b32.xlu0 %v251, 113
      %v689 = vpop.permute.xlu0 %688
      %690 = vrot.lane.b32.xlu0 %v255, 113
      %v691 = vpop.permute.xlu0 %690
      %692 = vrot.lane.b32.xlu0 %v252, 113
      %v693 = vpop.permute.xlu0 %692
      %694 = vrot.lane.b32.xlu0 %v256, 113
      %v695 = vpop.permute.xlu0 %694
      %vm696 = vcmp.lt.s32.totalorder %v282, 113
      %v697 = vsel %vm696, %v689, %v693
      %v698 = vsel %vm696, %v691, %v695
      %v699 = vsel %vm696, %v685, %v689
      %v700 = vsel %vm696, %v687, %v691
      %v701 = vsel %vm696, %v681, %v685
      %v702 = vsel %vm696, %v683, %v687
      %v703 = vsel %vm696, %v693, %v681
      %v704 = vsel %vm696, %v695, %v683
      %v705 = vlaneseq
      %v706 = vshrl.u32 %v705, 7
      %v707 = vsub.s32 6, %v706
      %v708 = vrot.slane %v257, %v707
      %v709 = vlaneseq
      %v710 = vshrl.u32 %v709, 7
      %v711 = vsub.s32 6, %v710
      %v712 = vrot.slane %v258, %v711
      %v713 = vlaneseq
      %v714 = vshrl.u32 %v713, 7
      %v715 = vsub.s32 6, %v714
      %v716 = vrot.slane %v259, %v715
      %v717 = vlaneseq
      %v718 = vshrl.u32 %v717, 7
      %v719 = vsub.s32 6, %v718
      %v720 = vrot.slane %v260, %v719
      %v721 = vmul.f32 %v708, %v701
      %v722 = vmul.f32 %v712, %v699
      %v723 = vmul.f32 %v716, %v697
      %v724 = vmul.f32 %v720, %v703
      %v725 = vmul.f32 %v708, %v702
      %v726 = vmul.f32 %v712, %v700
      %v727 = vmul.f32 %v716, %v698
      %v728 = vmul.f32 %v720, %v704
      %v729 = vpack.c.bf16 %v725, %v721
      %v730 = vpack.c.bf16 %v726, %v722
      %v731 = vpack.c.bf16 %v727, %v723
      %v732 = vpack.c.bf16 %v728, %v724
      %v737 = vunpack.c.l.b16 %v729
      %v738 = vunpack.c.l.b16 %v730
      %v739 = vunpack.c.l.b16 %v731
      %v740 = vunpack.c.l.b16 %v732
      %v741 = vunpack.c.h.b16 %v729
      %v742 = vunpack.c.h.b16 %v730
      %v743 = vunpack.c.h.b16 %v731
      %v744 = vunpack.c.h.b16 %v732
      %v745 = vpack.c.b16 %v738, %v737
      %v746 = vpack.c.b16 %v740, %v739
      %v747 = vpack.c.b16 %v742, %v741
      %v748 = vpack.c.b16 %v744, %v743
      %753 = vst [vmem:[#allocation2 + $0xc0] sm:$0xff] %v745
      %754 = vst [vmem:[#allocation2 + $0xc8] sm:$0xff] %v746
      %755 = vst [vmem:[#allocation2 + $0xd0] sm:$0xff] %v747
      %756 = vst [vmem:[#allocation2 + $0xd8] sm:$0xff] %v748
      %757 = vrot.lane.b32.xlu0 %v249, 112
      %v758 = vpop.permute.xlu0 %757
      %759 = vrot.lane.b32.xlu0 %v253, 112
      %v760 = vpop.permute.xlu0 %759
      %761 = vrot.lane.b32.xlu0 %v250, 112
      %v762 = vpop.permute.xlu0 %761
      %763 = vrot.lane.b32.xlu0 %v254, 112
      %v764 = vpop.permute.xlu0 %763
      %765 = vrot.lane.b32.xlu0 %v251, 112
      %v766 = vpop.permute.xlu0 %765
      %767 = vrot.lane.b32.xlu0 %v255, 112
      %v768 = vpop.permute.xlu0 %767
      %769 = vrot.lane.b32.xlu0 %v252, 112
      %v770 = vpop.permute.xlu0 %769
      %771 = vrot.lane.b32.xlu0 %v256, 112
      %v772 = vpop.permute.xlu0 %771
      %vm773 = vcmp.lt.s32.totalorder %v282, 112
      %v774 = vsel %vm773, %v766, %v770
      %v775 = vsel %vm773, %v768, %v772
      %v776 = vsel %vm773, %v762, %v766
      %v777 = vsel %vm773, %v764, %v768
      %v778 = vsel %vm773, %v758, %v762
      %v779 = vsel %vm773, %v760, %v764
      %v780 = vsel %vm773, %v770, %v758
      %v781 = vsel %vm773, %v772, %v760
      %v782 = vlaneseq
      %v783 = vshrl.u32 %v782, 7
      %v784 = vsub.s32 7, %v783
      %v785 = vrot.slane %v257, %v784
      %v786 = vlaneseq
      %v787 = vshrl.u32 %v786, 7
      %v788 = vsub.s32 7, %v787
      %v789 = vrot.slane %v258, %v788
      %v790 = vlaneseq
      %v791 = vshrl.u32 %v790, 7
      %v792 = vsub.s32 7, %v791
      %v793 = vrot.slane %v259, %v792
      %v794 = vlaneseq
      %v795 = vshrl.u32 %v794, 7
      %v796 = vsub.s32 7, %v795
      %v797 = vrot.slane %v260, %v796
      %v798 = vmul.f32 %v785, %v778
      %v799 = vmul.f32 %v789, %v776
      %v800 = vmul.f32 %v793, %v774
      %v801 = vmul.f32 %v797, %v780
      %v802 = vmul.f32 %v785, %v779
      %v803 = vmul.f32 %v789, %v777
      %v804 = vmul.f32 %v793, %v775
      %v805 = vmul.f32 %v797, %v781
      %v806 = vpack.c.bf16 %v802, %v798
      %v807 = vpack.c.bf16 %v803, %v799
      %v808 = vpack.c.bf16 %v804, %v800
      %v809 = vpack.c.bf16 %v805, %v801
      %v814 = vunpack.c.l.b16 %v806
      %v815 = vunpack.c.l.b16 %v807
      %v816 = vunpack.c.l.b16 %v808
      %v817 = vunpack.c.l.b16 %v809
      %v818 = vunpack.c.h.b16 %v806
      %v819 = vunpack.c.h.b16 %v807
      %v820 = vunpack.c.h.b16 %v808
      %v821 = vunpack.c.h.b16 %v809
      %v822 = vpack.c.b16 %v815, %v814
      %v823 = vpack.c.b16 %v817, %v816
      %v824 = vpack.c.b16 %v819, %v818
      %v825 = vpack.c.b16 %v821, %v820
      %830 = vst [vmem:[#allocation2 + $0xe0] sm:$0xff] %v822
      %831 = vst [vmem:[#allocation2 + $0xe8] sm:$0xff] %v823
      %832 = vst [vmem:[#allocation2 + $0xf0] sm:$0xff] %v824
      %833 = vst [vmem:[#allocation2 + $0xf8] sm:$0xff] %v825
      %834 = vrot.lane.b32.xlu0 %v249, 111
      %v835 = vpop.permute.xlu0 %834
      %836 = vrot.lane.b32.xlu0 %v253, 111
      %v837 = vpop.permute.xlu0 %836
      %838 = vrot.lane.b32.xlu0 %v250, 111
      %v839 = vpop.permute.xlu0 %838
      %840 = vrot.lane.b32.xlu0 %v254, 111
      %v841 = vpop.permute.xlu0 %840
      %842 = vrot.lane.b32.xlu0 %v251, 111
      %v843 = vpop.permute.xlu0 %842
      %844 = vrot.lane.b32.xlu0 %v255, 111
      %v845 = vpop.permute.xlu0 %844
      %846 = vrot.lane.b32.xlu0 %v252, 111
      %v847 = vpop.permute.xlu0 %846
      %848 = vrot.lane.b32.xlu0 %v256, 111
      %v849 = vpop.permute.xlu0 %848
      %vm850 = vcmp.lt.s32.totalorder %v282, 111
      %v851 = vsel %vm850, %v843, %v847
      %v852 = vsel %vm850, %v845, %v849
      %v853 = vsel %vm850, %v839, %v843
      %v854 = vsel %vm850, %v841, %v845
      %v855 = vsel %vm850, %v835, %v839
      %v856 = vsel %vm850, %v837, %v841
      %v857 = vsel %vm850, %v847, %v835
      %v858 = vsel %vm850, %v849, %v837
      %v859 = vlaneseq
      %v860 = vshrl.u32 %v859, 7
      %v861 = vsub.s32 0, %v860
      %v862 = vrot.slane %v261, %v861
      %v863 = vlaneseq
      %v864 = vshrl.u32 %v863, 7
      %v865 = vsub.s32 0, %v864
      %v866 = vrot.slane %v262, %v865
      %v867 = vlaneseq
      %v868 = vshrl.u32 %v867, 7
      %v869 = vsub.s32 0, %v868
      %v870 = vrot.slane %v263, %v869
      %v871 = vlaneseq
      %v872 = vshrl.u32 %v871, 7
      %v873 = vsub.s32 0, %v872
      %v874 = vrot.slane %v264, %v873
      %v875 = vmul.f32 %v862, %v855
      %v876 = vmul.f32 %v866, %v853
      %v877 = vmul.f32 %v870, %v851
      %v878 = vmul.f32 %v874, %v857
      %v879 = vmul.f32 %v862, %v856
      %v880 = vmul.f32 %v866, %v854
      %v881 = vmul.f32 %v870, %v852
      %v882 = vmul.f32 %v874, %v858
      %v883 = vpack.c.bf16 %v879, %v875
      %v884 = vpack.c.bf16 %v880, %v876
      %v885 = vpack.c.bf16 %v881, %v877
      %v886 = vpack.c.bf16 %v882, %v878
      %v891 = vunpack.c.l.b16 %v883
      %v892 = vunpack.c.l.b16 %v884
      %v893 = vunpack.c.l.b16 %v885
      %v894 = vunpack.c.l.b16 %v886
      %v895 = vunpack.c.h.b16 %v883
      %v896 = vunpack.c.h.b16 %v884
      %v897 = vunpack.c.h.b16 %v885
      %v898 = vunpack.c.h.b16 %v886
      %v899 = vpack.c.b16 %v892, %v891
      %v900 = vpack.c.b16 %v894, %v893
      %v901 = vpack.c.b16 %v896, %v895
      %v902 = vpack.c.b16 %v898, %v897
      %907 = vst [vmem:[#allocation2 + $0x100] sm:$0xff] %v899
      %908 = vst [vmem:[#allocation2 + $0x108] sm:$0xff] %v900
      %909 = vst [vmem:[#allocation2 + $0x110] sm:$0xff] %v901
      %910 = vst [vmem:[#allocation2 + $0x118] sm:$0xff] %v902
      %v911 = vld [vmem:[%s2] sm:$0xff]
      %v912 = vld [vmem:[%s2 + $0x8] sm:$0xff]
      %v913 = vld [vmem:[#allocation2] sm:$0xff]
      %v914 = vld [vmem:[#allocation2 + $0x8] sm:$0xff]
      %v915 = vld [vmem:[#allocation2 + $0x10] sm:$0xff]
      %v916 = vld [vmem:[#allocation2 + $0x18] sm:$0xff]
      %v917 = vld [vmem:[#allocation2 + $0x20] sm:$0xff]
      %v918 = vld [vmem:[#allocation2 + $0x28] sm:$0xff]
      %v919 = vld [vmem:[#allocation2 + $0x30] sm:$0xff]
      %v920 = vld [vmem:[#allocation2 + $0x38] sm:$0xff]
      %v921 = vld [vmem:[#allocation2 + $0x40] sm:$0xff]
      %v922 = vld [vmem:[#allocation2 + $0x48] sm:$0xff]
      %v923 = vld [vmem:[#allocation2 + $0x50] sm:$0xff]
      %v924 = vld [vmem:[#allocation2 + $0x58] sm:$0xff]
      %v925 = vld [vmem:[#allocation2 + $0x60] sm:$0xff]
      %v926 = vld [vmem:[#allocation2 + $0x68] sm:$0xff]
      %v927 = vld [vmem:[#allocation2 + $0x70] sm:$0xff]
      %v928 = vld [vmem:[#allocation2 + $0x78] sm:$0xff]
      %v929 = vld [vmem:[#allocation2 + $0x80] sm:$0xff]
      %v930 = vld [vmem:[#allocation2 + $0x88] sm:$0xff]
      %v931 = vld [vmem:[#allocation2 + $0x90] sm:$0xff]
      %v932 = vld [vmem:[#allocation2 + $0x98] sm:$0xff]
      %v933 = vld [vmem:[#allocation2 + $0xa0] sm:$0xff]
      %v934 = vld [vmem:[#allocation2 + $0xa8] sm:$0xff]
      %v935 = vld [vmem:[#allocation2 + $0xb0] sm:$0xff]
      %v936 = vld [vmem:[#allocation2 + $0xb8] sm:$0xff]
      %v937 = vld [vmem:[#allocation2 + $0xc0] sm:$0xff]
      %v938 = vld [vmem:[#allocation2 + $0xc8] sm:$0xff]
      %v939 = vld [vmem:[#allocation2 + $0xd0] sm:$0xff]
      %v940 = vld [vmem:[#allocation2 + $0xd8] sm:$0xff]
      %v941 = vld [vmem:[#allocation2 + $0xe0] sm:$0xff]
      %v942 = vld [vmem:[#allocation2 + $0xe8] sm:$0xff]
      %v943 = vld [vmem:[#allocation2 + $0xf0] sm:$0xff]
      %v944 = vld [vmem:[#allocation2 + $0xf8] sm:$0xff]
      %v945 = vld [vmem:[#allocation2 + $0x100] sm:$0xff]
      %v946 = vld [vmem:[#allocation2 + $0x108] sm:$0xff]
      %v947 = vld [vmem:[#allocation2 + $0x110] sm:$0xff]
      %v948 = vld [vmem:[#allocation2 + $0x118] sm:$0xff]
      %v949 = vld [vmem:[%s3] sm:$0xff]
      %v950 = vld [vmem:[%s3 + $0x8] sm:$0xff]
      %952 = vset.pattern.permute.xlu0 0
      %953 = vperm.xlu0 %952, %v949
      %v954 = vpop.permute.xlu0 %953
      %957 = vset.pattern.permute.xlu0 0
      %958 = vperm.xlu0 %957, %v950
      %v959 = vpop.permute.xlu0 %958
      %v963 = vunpack.c.l.b16 %v911
      %v964 = vunpack.c.h.b16 %v911
      %v965 = vunpack.c.l.b16 %v912
      %v966 = vunpack.c.h.b16 %v912
      %v967 = vpack.c.b16 %v965, %v963
      %v968 = vpack.c.b16 %v966, %v964
      %v1006 = vunpack.c.l.b16 %v913
      %v1007 = vunpack.c.h.b16 %v913
      %v1008 = vunpack.c.l.b16 %v914
      %v1009 = vunpack.c.h.b16 %v914
      %v1010 = vunpack.c.l.b16 %v915
      %v1011 = vunpack.c.h.b16 %v915
      %v1012 = vunpack.c.l.b16 %v916
      %v1013 = vunpack.c.h.b16 %v916
      %v1014 = vunpack.c.l.b16 %v917
      %v1015 = vunpack.c.h.b16 %v917
      %v1016 = vunpack.c.l.b16 %v918
      %v1017 = vunpack.c.h.b16 %v918
      %v1018 = vunpack.c.l.b16 %v919
      %v1019 = vunpack.c.h.b16 %v919
      %v1020 = vunpack.c.l.b16 %v920
      %v1021 = vunpack.c.h.b16 %v920
      %v1022 = vunpack.c.l.b16 %v921
      %v1023 = vunpack.c.h.b16 %v921
      %v1024 = vunpack.c.l.b16 %v922
      %v1025 = vunpack.c.h.b16 %v922
      %v1026 = vunpack.c.l.b16 %v923
      %v1027 = vunpack.c.h.b16 %v923
      %v1028 = vunpack.c.l.b16 %v924
      %v1029 = vunpack.c.h.b16 %v924
      %v1030 = vunpack.c.l.b16 %v925
      %v1031 = vunpack.c.h.b16 %v925
      %v1032 = vunpack.c.l.b16 %v926
      %v1033 = vunpack.c.h.b16 %v926
      %v1034 = vunpack.c.l.b16 %v927
      %v1035 = vunpack.c.h.b16 %v927
      %v1036 = vunpack.c.l.b16 %v928
      %v1037 = vunpack.c.h.b16 %v928
      %v1038 = vunpack.c.l.b16 %v929
      %v1039 = vunpack.c.h.b16 %v929
      %v1040 = vunpack.c.l.b16 %v930
      %v1041 = vunpack.c.h.b16 %v930
      %v1042 = vunpack.c.l.b16 %v931
      %v1043 = vunpack.c.h.b16 %v931
      %v1044 = vunpack.c.l.b16 %v932
      %v1045 = vunpack.c.h.b16 %v932
      %v1046 = vunpack.c.l.b16 %v933
      %v1047 = vunpack.c.h.b16 %v933
      %v1048 = vunpack.c.l.b16 %v934
      %v1049 = vunpack.c.h.b16 %v934
      %v1050 = vunpack.c.l.b16 %v935
      %v1051 = vunpack.c.h.b16 %v935
      %v1052 = vunpack.c.l.b16 %v936
      %v1053 = vunpack.c.h.b16 %v936
      %v1054 = vunpack.c.l.b16 %v937
      %v1055 = vunpack.c.h.b16 %v937
      %v1056 = vunpack.c.l.b16 %v938
      %v1057 = vunpack.c.h.b16 %v938
      %v1058 = vunpack.c.l.b16 %v939
      %v1059 = vunpack.c.h.b16 %v939
      %v1060 = vunpack.c.l.b16 %v940
      %v1061 = vunpack.c.h.b16 %v940
      %v1062 = vunpack.c.l.b16 %v941
      %v1063 = vunpack.c.h.b16 %v941
      %v1064 = vunpack.c.l.b16 %v942
      %v1065 = vunpack.c.h.b16 %v942
      %v1066 = vunpack.c.l.b16 %v943
      %v1067 = vunpack.c.h.b16 %v943
      %v1068 = vunpack.c.l.b16 %v944
      %v1069 = vunpack.c.h.b16 %v944
      %v1070 = vunpack.c.l.b16 %v945
      %v1071 = vunpack.c.h.b16 %v945
      %v1072 = vunpack.c.l.b16 %v946
      %v1073 = vunpack.c.h.b16 %v946
      %v1074 = vunpack.c.l.b16 %v947
      %v1075 = vunpack.c.h.b16 %v947
      %v1076 = vunpack.c.l.b16 %v948
      %v1077 = vunpack.c.h.b16 %v948
      %v1078 = vpack.c.b16 %v1010, %v1006
      %v1079 = vpack.c.b16 %v1011, %v1007
      %v1080 = vpack.c.b16 %v1012, %v1008
      %v1081 = vpack.c.b16 %v1013, %v1009
      %v1082 = vpack.c.b16 %v1018, %v1014
      %v1083 = vpack.c.b16 %v1019, %v1015
      %v1084 = vpack.c.b16 %v1020, %v1016
      %v1085 = vpack.c.b16 %v1021, %v1017
      %v1086 = vpack.c.b16 %v1026, %v1022
      %v1087 = vpack.c.b16 %v1027, %v1023
      %v1088 = vpack.c.b16 %v1028, %v1024
      %v1089 = vpack.c.b16 %v1029, %v1025
      %v1090 = vpack.c.b16 %v1034, %v1030
      %v1091 = vpack.c.b16 %v1035, %v1031
      %v1092 = vpack.c.b16 %v1036, %v1032
      %v1093 = vpack.c.b16 %v1037, %v1033
      %v1094 = vpack.c.b16 %v1042, %v1038
      %v1095 = vpack.c.b16 %v1043, %v1039
      %v1096 = vpack.c.b16 %v1044, %v1040
      %v1097 = vpack.c.b16 %v1045, %v1041
      %v1098 = vpack.c.b16 %v1050, %v1046
      %v1099 = vpack.c.b16 %v1051, %v1047
      %v1100 = vpack.c.b16 %v1052, %v1048
      %v1101 = vpack.c.b16 %v1053, %v1049
      %v1102 = vpack.c.b16 %v1058, %v1054
      %v1103 = vpack.c.b16 %v1059, %v1055
      %v1104 = vpack.c.b16 %v1060, %v1056
      %v1105 = vpack.c.b16 %v1061, %v1057
      %v1106 = vpack.c.b16 %v1066, %v1062
      %v1107 = vpack.c.b16 %v1067, %v1063
      %v1108 = vpack.c.b16 %v1068, %v1064
      %v1109 = vpack.c.b16 %v1069, %v1065
      %v1110 = vpack.c.b16 %v1074, %v1070
      %v1111 = vpack.c.b16 %v1075, %v1071
      %v1112 = vpack.c.b16 %v1076, %v1072
      %v1113 = vpack.c.b16 %v1077, %v1073
      %vm1150 = vcmask 130048
      %v1152 = vsel %vm1150, %v968, 0
      %1154 = vmatprep.subr.bf16.mxu0 %v1107
      %1155 = vmatpush1.bf16.msra.mxu0 %v1106
      %1156 = vmatprep.subr.bf16.mxu0 %v1103
      %1157 = vmatpush1.bf16.msra.mxu0 %v1102
      %1158 = vmatprep.subr.bf16.mxu0 %v1099
      %1159 = vmatpush1.bf16.msra.mxu0 %v1098
      %1160 = vmatprep.subr.bf16.mxu0 %v1095
      %1161 = vmatpush1.bf16.msra.mxu0 %v1094
      %1162 = vmatprep.subr.bf16.mxu0 %v1091
      %1163 = vmatpush1.bf16.msra.mxu0 %v1090
      %1164 = vmatprep.subr.bf16.mxu0 %v1087
      %1165 = vmatpush1.bf16.msra.mxu0 %v1086
      %1166 = vmatprep.subr.bf16.mxu0 %v1083
      %1167 = vmatpush1.bf16.msra.mxu0 %v1082
      %1168 = vmatprep.subr.bf16.mxu0 %v1079
      %1169 = vmatpush1.bf16.msra.mxu0 %v1078
      %1170 = vmatprep.subr.bf16.mxu0 0
      %1171 = vmatpush2.bf16.msra.mxu0 0
      %1172 = vmatprep.subr.bf16.mxu0 0
      %1173 = vmatpush2.bf16.msra.mxu0 0
      %1174 = vmatprep.subr.bf16.mxu0 0
      %1175 = vmatpush2.bf16.msra.mxu0 0
      %1176 = vmatprep.subr.bf16.mxu0 0
      %1177 = vmatpush2.bf16.msra.mxu0 0
      %1178 = vmatprep.subr.bf16.mxu0 0
      %1179 = vmatpush2.bf16.msra.mxu0 0
      %1180 = vmatprep.subr.bf16.mxu0 0
      %1181 = vmatpush2.bf16.msra.mxu0 0
      %1182 = vmatprep.subr.bf16.mxu0 0
      %1183 = vmatpush2.bf16.msra.mxu0 0
      %1184 = vmatprep.subr.bf16.mxu0 %v1111
      %1185 = vmatpush2.bf16.msra.mxu0 %v1110
      %1186 = vmatprep.mubr.bf16.mxu0 %v1152
      %1187 = vmatmul.mubr.bf16.gmra.mxu0 %v967
      %v1188 = vpop.f32.mrf.mxu0
      %v1189 = vadd.f32 %v954, %v1188
      %v1190 = vpop.f32.mrf.mxu0
      %v1191 = vadd.f32 %v954, %v1190
      %v1192 = vpop.f32.mrf.mxu0
      %v1193 = vadd.f32 %v959, %v1192
      %v1194 = vpop.f32.mrf.mxu0
      %v1195 = vadd.f32 %v959, %v1194
      %1196 = vdwg.mxu0
      %1197 = vmatprep.subr.bf16.mxu0 %v1109
      %1198 = vmatpush1.bf16.msra.mxu0 %v1108
      %1199 = vmatprep.subr.bf16.mxu0 %v1105
      %1200 = vmatpush1.bf16.msra.mxu0 %v1104
      %1201 = vmatprep.subr.bf16.mxu0 %v1101
      %1202 = vmatpush1.bf16.msra.mxu0 %v1100
      %1203 = vmatprep.subr.bf16.mxu0 %v1097
      %1204 = vmatpush1.bf16.msra.mxu0 %v1096
      %1205 = vmatprep.subr.bf16.mxu0 %v1093
      %1206 = vmatpush1.bf16.msra.mxu0 %v1092
      %1207 = vmatprep.subr.bf16.mxu0 %v1089
      %1208 = vmatpush1.bf16.msra.mxu0 %v1088
      %1209 = vmatprep.subr.bf16.mxu0 %v1085
      %1210 = vmatpush1.bf16.msra.mxu0 %v1084
      %1211 = vmatprep.subr.bf16.mxu0 %v1081
      %1212 = vmatpush1.bf16.msra.mxu0 %v1080
      %1213 = vmatprep.subr.bf16.mxu0 0
      %1214 = vmatpush2.bf16.msra.mxu0 0
      %1215 = vmatprep.subr.bf16.mxu0 0
      %1216 = vmatpush2.bf16.msra.mxu0 0
      %1217 = vmatprep.subr.bf16.mxu0 0
      %1218 = vmatpush2.bf16.msra.mxu0 0
      %1219 = vmatprep.subr.bf16.mxu0 0
      %1220 = vmatpush2.bf16.msra.mxu0 0
      %1221 = vmatprep.subr.bf16.mxu0 0
      %1222 = vmatpush2.bf16.msra.mxu0 0
      %1223 = vmatprep.subr.bf16.mxu0 0
      %1224 = vmatpush2.bf16.msra.mxu0 0
      %1225 = vmatprep.subr.bf16.mxu0 0
      %1226 = vmatpush2.bf16.msra.mxu0 0
      %1227 = vmatprep.subr.bf16.mxu0 %v1113
      %1228 = vmatpush2.bf16.msra.mxu0 %v1112
      %1229 = vmatprep.mubr.bf16.mxu0 %v1152
      %1230 = vmatmul.mubr.bf16.gmra.mxu0 %v967
      %v1231 = vpop.f32.mrf.mxu0
      %v1232 = vadd.f32 %v954, %v1231
      %v1233 = vpop.f32.mrf.mxu0
      %v1234 = vadd.f32 %v954, %v1233
      %v1235 = vpop.f32.mrf.mxu0
      %v1236 = vadd.f32 %v959, %v1235
      %v1237 = vpop.f32.mrf.mxu0
      %v1238 = vadd.f32 %v959, %v1237
      %1239 = vdwg.mxu0
      %v1240 = vmax.f32 %v1189, 0.0
      %v1241 = vmax.f32 %v1191, 0.0
      %v1242 = vmax.f32 %v1232, 0.0
      %v1243 = vmax.f32 %v1234, 0.0
      %v1244 = vmax.f32 %v1193, 0.0
      %v1245 = vmax.f32 %v1195, 0.0
      %v1246 = vmax.f32 %v1236, 0.0
      %v1247 = vmax.f32 %v1238, 0.0
      %1248 = vrot.lane.b32.xlu0 %v1240, 17
      %v1249 = vpop.permute.xlu0 %1248
      %1250 = vrot.lane.b32.xlu0 %v1244, 17
      %v1251 = vpop.permute.xlu0 %1250
      %1252 = vrot.lane.b32.xlu0 %v1241, 17
      %v1253 = vpop.permute.xlu0 %1252
      %1254 = vrot.lane.b32.xlu0 %v1245, 17
      %v1255 = vpop.permute.xlu0 %1254
      %1256 = vrot.lane.b32.xlu0 %v1242, 17
      %v1257 = vpop.permute.xlu0 %1256
      %1258 = vrot.lane.b32.xlu0 %v1246, 17
      %v1259 = vpop.permute.xlu0 %1258
      %1260 = vrot.lane.b32.xlu0 %v1243, 17
      %v1261 = vpop.permute.xlu0 %1260
      %1262 = vrot.lane.b32.xlu0 %v1247, 17
      %v1263 = vpop.permute.xlu0 %1262
      %v1264 = vsel %vm283, %v1257, %v1261
      %v1265 = vsel %vm283, %v1259, %v1263
      %v1266 = vsel %vm283, %v1253, %v1257
      %v1267 = vsel %vm283, %v1255, %v1259
      %v1268 = vsel %vm283, %v1249, %v1253
      %v1269 = vsel %vm283, %v1251, %v1255
      %v1270 = vsel %vm283, %v1261, %v1249
      %v1271 = vsel %vm283, %v1263, %v1251
      %v1272 = vmul.f32 %v295, %v1270
      %v1273 = vmul.f32 %v299, %v1268
      %v1274 = vmul.f32 %v303, %v1266
      %v1275 = vmul.f32 %v307, %v1264
      %v1276 = vmul.f32 %v295, %v1271
      %v1277 = vmul.f32 %v299, %v1269
      %v1278 = vmul.f32 %v303, %v1267
      %v1279 = vmul.f32 %v307, %v1265
      %v1280 = vpack.c.bf16 %v1276, %v1272
      %v1281 = vpack.c.bf16 %v1277, %v1273
      %v1282 = vpack.c.bf16 %v1278, %v1274
      %v1283 = vpack.c.bf16 %v1279, %v1275
      %v1288 = vunpack.c.l.b16 %v1280
      %v1289 = vunpack.c.l.b16 %v1281
      %v1290 = vunpack.c.l.b16 %v1282
      %v1291 = vunpack.c.l.b16 %v1283
      %v1292 = vunpack.c.h.b16 %v1280
      %v1293 = vunpack.c.h.b16 %v1281
      %v1294 = vunpack.c.h.b16 %v1282
      %v1295 = vunpack.c.h.b16 %v1283
      %v1296 = vpack.c.b16 %v1289, %v1288
      %v1297 = vpack.c.b16 %v1291, %v1290
      %v1298 = vpack.c.b16 %v1293, %v1292
      %v1299 = vpack.c.b16 %v1295, %v1294
      %1304 = vst [vmem:[#allocation2] sm:$0xff] %v1296
      %1305 = vst [vmem:[#allocation2 + $0x8] sm:$0xff] %v1297
      %1306 = vst [vmem:[#allocation2 + $0x10] sm:$0xff] %v1298
      %1307 = vst [vmem:[#allocation2 + $0x18] sm:$0xff] %v1299
      %1308 = vrot.lane.b32.xlu0 %v1240, 16
      %v1309 = vpop.permute.xlu0 %1308
      %1310 = vrot.lane.b32.xlu0 %v1244, 16
      %v1311 = vpop.permute.xlu0 %1310
      %1312 = vrot.lane.b32.xlu0 %v1241, 16
      %v1313 = vpop.permute.xlu0 %1312
      %1314 = vrot.lane.b32.xlu0 %v1245, 16
      %v1315 = vpop.permute.xlu0 %1314
      %1316 = vrot.lane.b32.xlu0 %v1242, 16
      %v1317 = vpop.permute.xlu0 %1316
      %1318 = vrot.lane.b32.xlu0 %v1246, 16
      %v1319 = vpop.permute.xlu0 %1318
      %1320 = vrot.lane.b32.xlu0 %v1243, 16
      %v1321 = vpop.permute.xlu0 %1320
      %1322 = vrot.lane.b32.xlu0 %v1247, 16
      %v1323 = vpop.permute.xlu0 %1322
      %v1324 = vsel %vm360, %v1317, %v1321
      %v1325 = vsel %vm360, %v1319, %v1323
      %v1326 = vsel %vm360, %v1313, %v1317
      %v1327 = vsel %vm360, %v1315, %v1319
      %v1328 = vsel %vm360, %v1309, %v1313
      %v1329 = vsel %vm360, %v1311, %v1315
      %v1330 = vsel %vm360, %v1321, %v1309
      %v1331 = vsel %vm360, %v1323, %v1311
      %v1332 = vmul.f32 %v372, %v1330
      %v1333 = vmul.f32 %v376, %v1328
      %v1334 = vmul.f32 %v380, %v1326
      %v1335 = vmul.f32 %v384, %v1324
      %v1336 = vmul.f32 %v372, %v1331
      %v1337 = vmul.f32 %v376, %v1329
      %v1338 = vmul.f32 %v380, %v1327
      %v1339 = vmul.f32 %v384, %v1325
      %v1340 = vpack.c.bf16 %v1336, %v1332
      %v1341 = vpack.c.bf16 %v1337, %v1333
      %v1342 = vpack.c.bf16 %v1338, %v1334
      %v1343 = vpack.c.bf16 %v1339, %v1335
      %v1348 = vunpack.c.l.b16 %v1340
      %v1349 = vunpack.c.l.b16 %v1341
      %v1350 = vunpack.c.l.b16 %v1342
      %v1351 = vunpack.c.l.b16 %v1343
      %v1352 = vunpack.c.h.b16 %v1340
      %v1353 = vunpack.c.h.b16 %v1341
      %v1354 = vunpack.c.h.b16 %v1342
      %v1355 = vunpack.c.h.b16 %v1343
      %v1356 = vpack.c.b16 %v1349, %v1348
      %v1357 = vpack.c.b16 %v1351, %v1350
      %v1358 = vpack.c.b16 %v1353, %v1352
      %v1359 = vpack.c.b16 %v1355, %v1354
      %1364 = vst [vmem:[#allocation2 + $0x20] sm:$0xff] %v1356
      %1365 = vst [vmem:[#allocation2 + $0x28] sm:$0xff] %v1357
      %1366 = vst [vmem:[#allocation2 + $0x30] sm:$0xff] %v1358
      %1367 = vst [vmem:[#allocation2 + $0x38] sm:$0xff] %v1359
      %1368 = vrot.lane.b32.xlu0 %v1240, 15
      %v1369 = vpop.permute.xlu0 %1368
      %1370 = vrot.lane.b32.xlu0 %v1244, 15
      %v1371 = vpop.permute.xlu0 %1370
      %1372 = vrot.lane.b32.xlu0 %v1241, 15
      %v1373 = vpop.permute.xlu0 %1372
      %1374 = vrot.lane.b32.xlu0 %v1245, 15
      %v1375 = vpop.permute.xlu0 %1374
      %1376 = vrot.lane.b32.xlu0 %v1242, 15
      %v1377 = vpop.permute.xlu0 %1376
      %1378 = vrot.lane.b32.xlu0 %v1246, 15
      %v1379 = vpop.permute.xlu0 %1378
      %1380 = vrot.lane.b32.xlu0 %v1243, 15
      %v1381 = vpop.permute.xlu0 %1380
      %1382 = vrot.lane.b32.xlu0 %v1247, 15
      %v1383 = vpop.permute.xlu0 %1382
      %v1384 = vsel %vm437, %v1377, %v1381
      %v1385 = vsel %vm437, %v1379, %v1383
      %v1386 = vsel %vm437, %v1373, %v1377
      %v1387 = vsel %vm437, %v1375, %v1379
      %v1388 = vsel %vm437, %v1369, %v1373
      %v1389 = vsel %vm437, %v1371, %v1375
      %v1390 = vsel %vm437, %v1381, %v1369
      %v1391 = vsel %vm437, %v1383, %v1371
      %v1392 = vmul.f32 %v449, %v1390
      %v1393 = vmul.f32 %v453, %v1388
      %v1394 = vmul.f32 %v457, %v1386
      %v1395 = vmul.f32 %v461, %v1384
      %v1396 = vmul.f32 %v449, %v1391
      %v1397 = vmul.f32 %v453, %v1389
      %v1398 = vmul.f32 %v457, %v1387
      %v1399 = vmul.f32 %v461, %v1385
      %v1400 = vpack.c.bf16 %v1396, %v1392
      %v1401 = vpack.c.bf16 %v1397, %v1393
      %v1402 = vpack.c.bf16 %v1398, %v1394
      %v1403 = vpack.c.bf16 %v1399, %v1395
      %v1408 = vunpack.c.l.b16 %v1400
      %v1409 = vunpack.c.l.b16 %v1401
      %v1410 = vunpack.c.l.b16 %v1402
      %v1411 = vunpack.c.l.b16 %v1403
      %v1412 = vunpack.c.h.b16 %v1400
      %v1413 = vunpack.c.h.b16 %v1401
      %v1414 = vunpack.c.h.b16 %v1402
      %v1415 = vunpack.c.h.b16 %v1403
      %v1416 = vpack.c.b16 %v1409, %v1408
      %v1417 = vpack.c.b16 %v1411, %v1410
      %v1418 = vpack.c.b16 %v1413, %v1412
      %v1419 = vpack.c.b16 %v1415, %v1414
      %1424 = vst [vmem:[#allocation2 + $0x40] sm:$0xff] %v1416
      %1425 = vst [vmem:[#allocation2 + $0x48] sm:$0xff] %v1417
      %1426 = vst [vmem:[#allocation2 + $0x50] sm:$0xff] %v1418
      %1427 = vst [vmem:[#allocation2 + $0x58] sm:$0xff] %v1419
      %1428 = vrot.lane.b32.xlu0 %v1240, 1
      %v1429 = vpop.permute.xlu0 %1428
      %1430 = vrot.lane.b32.xlu0 %v1244, 1
      %v1431 = vpop.permute.xlu0 %1430
      %1432 = vrot.lane.b32.xlu0 %v1241, 1
      %v1433 = vpop.permute.xlu0 %1432
      %1434 = vrot.lane.b32.xlu0 %v1245, 1
      %v1435 = vpop.permute.xlu0 %1434
      %1436 = vrot.lane.b32.xlu0 %v1242, 1
      %v1437 = vpop.permute.xlu0 %1436
      %1438 = vrot.lane.b32.xlu0 %v1246, 1
      %v1439 = vpop.permute.xlu0 %1438
      %1440 = vrot.lane.b32.xlu0 %v1243, 1
      %v1441 = vpop.permute.xlu0 %1440
      %1442 = vrot.lane.b32.xlu0 %v1247, 1
      %v1443 = vpop.permute.xlu0 %1442
      %v1444 = vsel %vm514, %v1437, %v1441
      %v1445 = vsel %vm514, %v1439, %v1443
      %v1446 = vsel %vm514, %v1433, %v1437
      %v1447 = vsel %vm514, %v1435, %v1439
      %v1448 = vsel %vm514, %v1429, %v1433
      %v1449 = vsel %vm514, %v1431, %v1435
      %v1450 = vsel %vm514, %v1441, %v1429
      %v1451 = vsel %vm514, %v1443, %v1431
      %v1452 = vmul.f32 %v526, %v1450
      %v1453 = vmul.f32 %v530, %v1448
      %v1454 = vmul.f32 %v534, %v1446
      %v1455 = vmul.f32 %v538, %v1444
      %v1456 = vmul.f32 %v526, %v1451
      %v1457 = vmul.f32 %v530, %v1449
      %v1458 = vmul.f32 %v534, %v1447
      %v1459 = vmul.f32 %v538, %v1445
      %v1460 = vpack.c.bf16 %v1456, %v1452
      %v1461 = vpack.c.bf16 %v1457, %v1453
      %v1462 = vpack.c.bf16 %v1458, %v1454
      %v1463 = vpack.c.bf16 %v1459, %v1455
      %v1468 = vunpack.c.l.b16 %v1460
      %v1469 = vunpack.c.l.b16 %v1461
      %v1470 = vunpack.c.l.b16 %v1462
      %v1471 = vunpack.c.l.b16 %v1463
      %v1472 = vunpack.c.h.b16 %v1460
      %v1473 = vunpack.c.h.b16 %v1461
      %v1474 = vunpack.c.h.b16 %v1462
      %v1475 = vunpack.c.h.b16 %v1463
      %v1476 = vpack.c.b16 %v1469, %v1468
      %v1477 = vpack.c.b16 %v1471, %v1470
      %v1478 = vpack.c.b16 %v1473, %v1472
      %v1479 = vpack.c.b16 %v1475, %v1474
      %1484 = vst [vmem:[#allocation2 + $0x60] sm:$0xff] %v1476
      %1485 = vst [vmem:[#allocation2 + $0x68] sm:$0xff] %v1477
      %1486 = vst [vmem:[#allocation2 + $0x70] sm:$0xff] %v1478
      %1487 = vst [vmem:[#allocation2 + $0x78] sm:$0xff] %v1479
      %v1488 = vpack.c.bf16 %v1244, %v1240
      %v1489 = vpack.c.bf16 %v1245, %v1241
      %v1490 = vpack.c.bf16 %v1246, %v1242
      %v1491 = vpack.c.bf16 %v1247, %v1243
      %v1496 = vunpack.c.l.b16 %v1488
      %v1497 = vunpack.c.l.b16 %v1489
      %v1498 = vunpack.c.l.b16 %v1490
      %v1499 = vunpack.c.l.b16 %v1491
      %v1500 = vunpack.c.h.b16 %v1488
      %v1501 = vunpack.c.h.b16 %v1489
      %v1502 = vunpack.c.h.b16 %v1490
      %v1503 = vunpack.c.h.b16 %v1491
      %v1504 = vpack.c.b16 %v1497, %v1496
      %v1505 = vpack.c.b16 %v1499, %v1498
      %v1506 = vpack.c.b16 %v1501, %v1500
      %v1507 = vpack.c.b16 %v1503, %v1502
      %1512 = vst [vmem:[#allocation2 + $0x80] sm:$0xff] %v1504
      %1513 = vst [vmem:[#allocation2 + $0x88] sm:$0xff] %v1505
      %1514 = vst [vmem:[#allocation2 + $0x90] sm:$0xff] %v1506
      %1515 = vst [vmem:[#allocation2 + $0x98] sm:$0xff] %v1507
      %1516 = vrot.lane.b32.xlu0 %v1240, 127
      %v1517 = vpop.permute.xlu0 %1516
      %1518 = vrot.lane.b32.xlu0 %v1244, 127
      %v1519 = vpop.permute.xlu0 %1518
      %1520 = vrot.lane.b32.xlu0 %v1241, 127
      %v1521 = vpop.permute.xlu0 %1520
      %1522 = vrot.lane.b32.xlu0 %v1245, 127
      %v1523 = vpop.permute.xlu0 %1522
      %1524 = vrot.lane.b32.xlu0 %v1242, 127
      %v1525 = vpop.permute.xlu0 %1524
      %1526 = vrot.lane.b32.xlu0 %v1246, 127
      %v1527 = vpop.permute.xlu0 %1526
      %1528 = vrot.lane.b32.xlu0 %v1243, 127
      %v1529 = vpop.permute.xlu0 %1528
      %1530 = vrot.lane.b32.xlu0 %v1247, 127
      %v1531 = vpop.permute.xlu0 %1530
      %v1532 = vsel %vm619, %v1525, %v1529
      %v1533 = vsel %vm619, %v1527, %v1531
      %v1534 = vsel %vm619, %v1521, %v1525
      %v1535 = vsel %vm619, %v1523, %v1527
      %v1536 = vsel %vm619, %v1517, %v1521
      %v1537 = vsel %vm619, %v1519, %v1523
      %v1538 = vsel %vm619, %v1529, %v1517
      %v1539 = vsel %vm619, %v1531, %v1519
      %v1540 = vmul.f32 %v631, %v1536
      %v1541 = vmul.f32 %v635, %v1534
      %v1542 = vmul.f32 %v639, %v1532
      %v1543 = vmul.f32 %v643, %v1538
      %v1544 = vmul.f32 %v631, %v1537
      %v1545 = vmul.f32 %v635, %v1535
      %v1546 = vmul.f32 %v639, %v1533
      %v1547 = vmul.f32 %v643, %v1539
      %v1548 = vpack.c.bf16 %v1544, %v1540
      %v1549 = vpack.c.bf16 %v1545, %v1541
      %v1550 = vpack.c.bf16 %v1546, %v1542
      %v1551 = vpack.c.bf16 %v1547, %v1543
      %v1556 = vunpack.c.l.b16 %v1548
      %v1557 = vunpack.c.l.b16 %v1549
      %v1558 = vunpack.c.l.b16 %v1550
      %v1559 = vunpack.c.l.b16 %v1551
      %v1560 = vunpack.c.h.b16 %v1548
      %v1561 = vunpack.c.h.b16 %v1549
      %v1562 = vunpack.c.h.b16 %v1550
      %v1563 = vunpack.c.h.b16 %v1551
      %v1564 = vpack.c.b16 %v1557, %v1556
      %v1565 = vpack.c.b16 %v1559, %v1558
      %v1566 = vpack.c.b16 %v1561, %v1560
      %v1567 = vpack.c.b16 %v1563, %v1562
      %1572 = vst [vmem:[#allocation2 + $0xa0] sm:$0xff] %v1564
      %1573 = vst [vmem:[#allocation2 + $0xa8] sm:$0xff] %v1565
      %1574 = vst [vmem:[#allocation2 + $0xb0] sm:$0xff] %v1566
      %1575 = vst [vmem:[#allocation2 + $0xb8] sm:$0xff] %v1567
      %1576 = vrot.lane.b32.xlu0 %v1240, 113
      %v1577 = vpop.permute.xlu0 %1576
      %1578 = vrot.lane.b32.xlu0 %v1244, 113
      %v1579 = vpop.permute.xlu0 %1578
      %1580 = vrot.lane.b32.xlu0 %v1241, 113
      %v1581 = vpop.permute.xlu0 %1580
      %1582 = vrot.lane.b32.xlu0 %v1245, 113
      %v1583 = vpop.permute.xlu0 %1582
      %1584 = vrot.lane.b32.xlu0 %v1242, 113
      %v1585 = vpop.permute.xlu0 %1584
      %1586 = vrot.lane.b32.xlu0 %v1246, 113
      %v1587 = vpop.permute.xlu0 %1586
      %1588 = vrot.lane.b32.xlu0 %v1243, 113
      %v1589 = vpop.permute.xlu0 %1588
      %1590 = vrot.lane.b32.xlu0 %v1247, 113
      %v1591 = vpop.permute.xlu0 %1590
      %v1592 = vsel %vm696, %v1585, %v1589
      %v1593 = vsel %vm696, %v1587, %v1591
      %v1594 = vsel %vm696, %v1581, %v1585
      %v1595 = vsel %vm696, %v1583, %v1587
      %v1596 = vsel %vm696, %v1577, %v1581
      %v1597 = vsel %vm696, %v1579, %v1583
      %v1598 = vsel %vm696, %v1589, %v1577
      %v1599 = vsel %vm696, %v1591, %v1579
      %v1600 = vmul.f32 %v708, %v1596
      %v1601 = vmul.f32 %v712, %v1594
      %v1602 = vmul.f32 %v716, %v1592
      %v1603 = vmul.f32 %v720, %v1598
      %v1604 = vmul.f32 %v708, %v1597
      %v1605 = vmul.f32 %v712, %v1595
      %v1606 = vmul.f32 %v716, %v1593
      %v1607 = vmul.f32 %v720, %v1599
      %v1608 = vpack.c.bf16 %v1604, %v1600
      %v1609 = vpack.c.bf16 %v1605, %v1601
      %v1610 = vpack.c.bf16 %v1606, %v1602
      %v1611 = vpack.c.bf16 %v1607, %v1603
      %v1616 = vunpack.c.l.b16 %v1608
      %v1617 = vunpack.c.l.b16 %v1609
      %v1618 = vunpack.c.l.b16 %v1610
      %v1619 = vunpack.c.l.b16 %v1611
      %v1620 = vunpack.c.h.b16 %v1608
      %v1621 = vunpack.c.h.b16 %v1609
      %v1622 = vunpack.c.h.b16 %v1610
      %v1623 = vunpack.c.h.b16 %v1611
      %v1624 = vpack.c.b16 %v1617, %v1616
      %v1625 = vpack.c.b16 %v1619, %v1618
      %v1626 = vpack.c.b16 %v1621, %v1620
      %v1627 = vpack.c.b16 %v1623, %v1622
      %1632 = vst [vmem:[#allocation2 + $0xc0] sm:$0xff] %v1624
      %1633 = vst [vmem:[#allocation2 + $0xc8] sm:$0xff] %v1625
      %1634 = vst [vmem:[#allocation2 + $0xd0] sm:$0xff] %v1626
      %1635 = vst [vmem:[#allocation2 + $0xd8] sm:$0xff] %v1627
      %1636 = vrot.lane.b32.xlu0 %v1240, 112
      %v1637 = vpop.permute.xlu0 %1636
      %1638 = vrot.lane.b32.xlu0 %v1244, 112
      %v1639 = vpop.permute.xlu0 %1638
      %1640 = vrot.lane.b32.xlu0 %v1241, 112
      %v1641 = vpop.permute.xlu0 %1640
      %1642 = vrot.lane.b32.xlu0 %v1245, 112
      %v1643 = vpop.permute.xlu0 %1642
      %1644 = vrot.lane.b32.xlu0 %v1242, 112
      %v1645 = vpop.permute.xlu0 %1644
      %1646 = vrot.lane.b32.xlu0 %v1246, 112
      %v1647 = vpop.permute.xlu0 %1646
      %1648 = vrot.lane.b32.xlu0 %v1243, 112
      %v1649 = vpop.permute.xlu0 %1648
      %1650 = vrot.lane.b32.xlu0 %v1247, 112
      %v1651 = vpop.permute.xlu0 %1650
      %v1652 = vsel %vm773, %v1645, %v1649
      %v1653 = vsel %vm773, %v1647, %v1651
      %v1654 = vsel %vm773, %v1641, %v1645
      %v1655 = vsel %vm773, %v1643, %v1647
      %v1656 = vsel %vm773, %v1637, %v1641
      %v1657 = vsel %vm773, %v1639, %v1643
      %v1658 = vsel %vm773, %v1649, %v1637
      %v1659 = vsel %vm773, %v1651, %v1639
      %v1660 = vmul.f32 %v785, %v1656
      %v1661 = vmul.f32 %v789, %v1654
      %v1662 = vmul.f32 %v793, %v1652
      %v1663 = vmul.f32 %v797, %v1658
      %v1664 = vmul.f32 %v785, %v1657
      %v1665 = vmul.f32 %v789, %v1655
      %v1666 = vmul.f32 %v793, %v1653
      %v1667 = vmul.f32 %v797, %v1659
      %v1668 = vpack.c.bf16 %v1664, %v1660
      %v1669 = vpack.c.bf16 %v1665, %v1661
      %v1670 = vpack.c.bf16 %v1666, %v1662
      %v1671 = vpack.c.bf16 %v1667, %v1663
      %v1676 = vunpack.c.l.b16 %v1668
      %v1677 = vunpack.c.l.b16 %v1669
      %v1678 = vunpack.c.l.b16 %v1670
      %v1679 = vunpack.c.l.b16 %v1671
      %v1680 = vunpack.c.h.b16 %v1668
      %v1681 = vunpack.c.h.b16 %v1669
      %v1682 = vunpack.c.h.b16 %v1670
      %v1683 = vunpack.c.h.b16 %v1671
      %v1684 = vpack.c.b16 %v1677, %v1676
      %v1685 = vpack.c.b16 %v1679, %v1678
      %v1686 = vpack.c.b16 %v1681, %v1680
      %v1687 = vpack.c.b16 %v1683, %v1682
      %1692 = vst [vmem:[#allocation2 + $0xe0] sm:$0xff] %v1684
      %1693 = vst [vmem:[#allocation2 + $0xe8] sm:$0xff] %v1685
      %1694 = vst [vmem:[#allocation2 + $0xf0] sm:$0xff] %v1686
      %1695 = vst [vmem:[#allocation2 + $0xf8] sm:$0xff] %v1687
      %1696 = vrot.lane.b32.xlu0 %v1240, 111
      %v1697 = vpop.permute.xlu0 %1696
      %1698 = vrot.lane.b32.xlu0 %v1244, 111
      %v1699 = vpop.permute.xlu0 %1698
      %1700 = vrot.lane.b32.xlu0 %v1241, 111
      %v1701 = vpop.permute.xlu0 %1700
      %1702 = vrot.lane.b32.xlu0 %v1245, 111
      %v1703 = vpop.permute.xlu0 %1702
      %1704 = vrot.lane.b32.xlu0 %v1242, 111
      %v1705 = vpop.permute.xlu0 %1704
      %1706 = vrot.lane.b32.xlu0 %v1246, 111
      %v1707 = vpop.permute.xlu0 %1706
      %1708 = vrot.lane.b32.xlu0 %v1243, 111
      %v1709 = vpop.permute.xlu0 %1708
      %1710 = vrot.lane.b32.xlu0 %v1247, 111
      %v1711 = vpop.permute.xlu0 %1710
      %v1712 = vsel %vm850, %v1705, %v1709
      %v1713 = vsel %vm850, %v1707, %v1711
      %v1714 = vsel %vm850, %v1701, %v1705
      %v1715 = vsel %vm850, %v1703, %v1707
      %v1716 = vsel %vm850, %v1697, %v1701
      %v1717 = vsel %vm850, %v1699, %v1703
      %v1718 = vsel %vm850, %v1709, %v1697
      %v1719 = vsel %vm850, %v1711, %v1699
      %v1720 = vmul.f32 %v862, %v1716
      %v1721 = vmul.f32 %v866, %v1714
      %v1722 = vmul.f32 %v870, %v1712
      %v1723 = vmul.f32 %v874, %v1718
      %v1724 = vmul.f32 %v862, %v1717
      %v1725 = vmul.f32 %v866, %v1715
      %v1726 = vmul.f32 %v870, %v1713
      %v1727 = vmul.f32 %v874, %v1719
      %v1728 = vpack.c.bf16 %v1724, %v1720
      %v1729 = vpack.c.bf16 %v1725, %v1721
      %v1730 = vpack.c.bf16 %v1726, %v1722
      %v1731 = vpack.c.bf16 %v1727, %v1723
      %v1736 = vunpack.c.l.b16 %v1728
      %v1737 = vunpack.c.l.b16 %v1729
      %v1738 = vunpack.c.l.b16 %v1730
      %v1739 = vunpack.c.l.b16 %v1731
      %v1740 = vunpack.c.h.b16 %v1728
      %v1741 = vunpack.c.h.b16 %v1729
      %v1742 = vunpack.c.h.b16 %v1730
      %v1743 = vunpack.c.h.b16 %v1731
      %v1744 = vpack.c.b16 %v1737, %v1736
      %v1745 = vpack.c.b16 %v1739, %v1738
      %v1746 = vpack.c.b16 %v1741, %v1740
      %v1747 = vpack.c.b16 %v1743, %v1742
      %1752 = vst [vmem:[#allocation2 + $0x100] sm:$0xff] %v1744
      %1753 = vst [vmem:[#allocation2 + $0x108] sm:$0xff] %v1745
      %1754 = vst [vmem:[#allocation2 + $0x110] sm:$0xff] %v1746
      %1755 = vst [vmem:[#allocation2 + $0x118] sm:$0xff] %v1747
      %v1756 = vld [vmem:[%s4] sm:$0xff]
      %v1757 = vld [vmem:[%s4 + $0x8] sm:$0xff]
      %v1758 = vld [vmem:[#allocation2] sm:$0xff]
      %v1759 = vld [vmem:[#allocation2 + $0x8] sm:$0xff]
      %v1760 = vld [vmem:[#allocation2 + $0x10] sm:$0xff]
      %v1761 = vld [vmem:[#allocation2 + $0x18] sm:$0xff]
      %v1762 = vld [vmem:[#allocation2 + $0x20] sm:$0xff]
      %v1763 = vld [vmem:[#allocation2 + $0x28] sm:$0xff]
      %v1764 = vld [vmem:[#allocation2 + $0x30] sm:$0xff]
      %v1765 = vld [vmem:[#allocation2 + $0x38] sm:$0xff]
      %v1766 = vld [vmem:[#allocation2 + $0x40] sm:$0xff]
      %v1767 = vld [vmem:[#allocation2 + $0x48] sm:$0xff]
      %v1768 = vld [vmem:[#allocation2 + $0x50] sm:$0xff]
      %v1769 = vld [vmem:[#allocation2 + $0x58] sm:$0xff]
      %v1770 = vld [vmem:[#allocation2 + $0x60] sm:$0xff]
      %v1771 = vld [vmem:[#allocation2 + $0x68] sm:$0xff]
      %v1772 = vld [vmem:[#allocation2 + $0x70] sm:$0xff]
      %v1773 = vld [vmem:[#allocation2 + $0x78] sm:$0xff]
      %v1774 = vld [vmem:[#allocation2 + $0x80] sm:$0xff]
      %v1775 = vld [vmem:[#allocation2 + $0x88] sm:$0xff]
      %v1776 = vld [vmem:[#allocation2 + $0x90] sm:$0xff]
      %v1777 = vld [vmem:[#allocation2 + $0x98] sm:$0xff]
      %v1778 = vld [vmem:[#allocation2 + $0xa0] sm:$0xff]
      %v1779 = vld [vmem:[#allocation2 + $0xa8] sm:$0xff]
      %v1780 = vld [vmem:[#allocation2 + $0xb0] sm:$0xff]
      %v1781 = vld [vmem:[#allocation2 + $0xb8] sm:$0xff]
      %v1782 = vld [vmem:[#allocation2 + $0xc0] sm:$0xff]
      %v1783 = vld [vmem:[#allocation2 + $0xc8] sm:$0xff]
      %v1784 = vld [vmem:[#allocation2 + $0xd0] sm:$0xff]
      %v1785 = vld [vmem:[#allocation2 + $0xd8] sm:$0xff]
      %v1786 = vld [vmem:[#allocation2 + $0xe0] sm:$0xff]
      %v1787 = vld [vmem:[#allocation2 + $0xe8] sm:$0xff]
      %v1788 = vld [vmem:[#allocation2 + $0xf0] sm:$0xff]
      %v1789 = vld [vmem:[#allocation2 + $0xf8] sm:$0xff]
      %v1790 = vld [vmem:[#allocation2 + $0x100] sm:$0xff]
      %v1791 = vld [vmem:[#allocation2 + $0x108] sm:$0xff]
      %v1792 = vld [vmem:[#allocation2 + $0x110] sm:$0xff]
      %v1793 = vld [vmem:[#allocation2 + $0x118] sm:$0xff]
      %v1794 = vld [vmem:[%s5] sm:$0xff]
      %v1795 = vld [vmem:[%s5 + $0x8] sm:$0xff]
      %1797 = vset.pattern.permute.xlu0 0
      %1798 = vperm.xlu0 %1797, %v1794
      %v1799 = vpop.permute.xlu0 %1798
      %1802 = vset.pattern.permute.xlu0 0
      %1803 = vperm.xlu0 %1802, %v1795
      %v1804 = vpop.permute.xlu0 %1803
      %v1808 = vunpack.c.l.b16 %v1756
      %v1809 = vunpack.c.h.b16 %v1756
      %v1810 = vunpack.c.l.b16 %v1757
      %v1811 = vunpack.c.h.b16 %v1757
      %v1812 = vpack.c.b16 %v1810, %v1808
      %v1813 = vpack.c.b16 %v1811, %v1809
      %v1851 = vunpack.c.l.b16 %v1758
      %v1852 = vunpack.c.h.b16 %v1758
      %v1853 = vunpack.c.l.b16 %v1759
      %v1854 = vunpack.c.h.b16 %v1759
      %v1855 = vunpack.c.l.b16 %v1760
      %v1856 = vunpack.c.h.b16 %v1760
      %v1857 = vunpack.c.l.b16 %v1761
      %v1858 = vunpack.c.h.b16 %v1761
      %v1859 = vunpack.c.l.b16 %v1762
      %v1860 = vunpack.c.h.b16 %v1762
      %v1861 = vunpack.c.l.b16 %v1763
      %v1862 = vunpack.c.h.b16 %v1763
      %v1863 = vunpack.c.l.b16 %v1764
      %v1864 = vunpack.c.h.b16 %v1764
      %v1865 = vunpack.c.l.b16 %v1765
      %v1866 = vunpack.c.h.b16 %v1765
      %v1867 = vunpack.c.l.b16 %v1766
      %v1868 = vunpack.c.h.b16 %v1766
      %v1869 = vunpack.c.l.b16 %v1767
      %v1870 = vunpack.c.h.b16 %v1767
      %v1871 = vunpack.c.l.b16 %v1768
      %v1872 = vunpack.c.h.b16 %v1768
      %v1873 = vunpack.c.l.b16 %v1769
      %v1874 = vunpack.c.h.b16 %v1769
      %v1875 = vunpack.c.l.b16 %v1770
      %v1876 = vunpack.c.h.b16 %v1770
      %v1877 = vunpack.c.l.b16 %v1771
      %v1878 = vunpack.c.h.b16 %v1771
      %v1879 = vunpack.c.l.b16 %v1772
      %v1880 = vunpack.c.h.b16 %v1772
      %v1881 = vunpack.c.l.b16 %v1773
      %v1882 = vunpack.c.h.b16 %v1773
      %v1883 = vunpack.c.l.b16 %v1774
      %v1884 = vunpack.c.h.b16 %v1774
      %v1885 = vunpack.c.l.b16 %v1775
      %v1886 = vunpack.c.h.b16 %v1775
      %v1887 = vunpack.c.l.b16 %v1776
      %v1888 = vunpack.c.h.b16 %v1776
      %v1889 = vunpack.c.l.b16 %v1777
      %v1890 = vunpack.c.h.b16 %v1777
      %v1891 = vunpack.c.l.b16 %v1778
      %v1892 = vunpack.c.h.b16 %v1778
      %v1893 = vunpack.c.l.b16 %v1779
      %v1894 = vunpack.c.h.b16 %v1779
      %v1895 = vunpack.c.l.b16 %v1780
      %v1896 = vunpack.c.h.b16 %v1780
      %v1897 = vunpack.c.l.b16 %v1781
      %v1898 = vunpack.c.h.b16 %v1781
      %v1899 = vunpack.c.l.b16 %v1782
      %v1900 = vunpack.c.h.b16 %v1782
      %v1901 = vunpack.c.l.b16 %v1783
      %v1902 = vunpack.c.h.b16 %v1783
      %v1903 = vunpack.c.l.b16 %v1784
      %v1904 = vunpack.c.h.b16 %v1784
      %v1905 = vunpack.c.l.b16 %v1785
      %v1906 = vunpack.c.h.b16 %v1785
      %v1907 = vunpack.c.l.b16 %v1786
      %v1908 = vunpack.c.h.b16 %v1786
      %v1909 = vunpack.c.l.b16 %v1787
      %v1910 = vunpack.c.h.b16 %v1787
      %v1911 = vunpack.c.l.b16 %v1788
      %v1912 = vunpack.c.h.b16 %v1788
      %v1913 = vunpack.c.l.b16 %v1789
      %v1914 = vunpack.c.h.b16 %v1789
      %v1915 = vunpack.c.l.b16 %v1790
      %v1916 = vunpack.c.h.b16 %v1790
      %v1917 = vunpack.c.l.b16 %v1791
      %v1918 = vunpack.c.h.b16 %v1791
      %v1919 = vunpack.c.l.b16 %v1792
      %v1920 = vunpack.c.h.b16 %v1792
      %v1921 = vunpack.c.l.b16 %v1793
      %v1922 = vunpack.c.h.b16 %v1793
      %v1923 = vpack.c.b16 %v1855, %v1851
      %v1924 = vpack.c.b16 %v1856, %v1852
      %v1925 = vpack.c.b16 %v1857, %v1853
      %v1926 = vpack.c.b16 %v1858, %v1854
      %v1927 = vpack.c.b16 %v1863, %v1859
      %v1928 = vpack.c.b16 %v1864, %v1860
      %v1929 = vpack.c.b16 %v1865, %v1861
      %v1930 = vpack.c.b16 %v1866, %v1862
      %v1931 = vpack.c.b16 %v1871, %v1867
      %v1932 = vpack.c.b16 %v1872, %v1868
      %v1933 = vpack.c.b16 %v1873, %v1869
      %v1934 = vpack.c.b16 %v1874, %v1870
      %v1935 = vpack.c.b16 %v1879, %v1875
      %v1936 = vpack.c.b16 %v1880, %v1876
      %v1937 = vpack.c.b16 %v1881, %v1877
      %v1938 = vpack.c.b16 %v1882, %v1878
      %v1939 = vpack.c.b16 %v1887, %v1883
      %v1940 = vpack.c.b16 %v1888, %v1884
      %v1941 = vpack.c.b16 %v1889, %v1885
      %v1942 = vpack.c.b16 %v1890, %v1886
      %v1943 = vpack.c.b16 %v1895, %v1891
      %v1944 = vpack.c.b16 %v1896, %v1892
      %v1945 = vpack.c.b16 %v1897, %v1893
      %v1946 = vpack.c.b16 %v1898, %v1894
      %v1947 = vpack.c.b16 %v1903, %v1899
      %v1948 = vpack.c.b16 %v1904, %v1900
      %v1949 = vpack.c.b16 %v1905, %v1901
      %v1950 = vpack.c.b16 %v1906, %v1902
      %v1951 = vpack.c.b16 %v1911, %v1907
      %v1952 = vpack.c.b16 %v1912, %v1908
      %v1953 = vpack.c.b16 %v1913, %v1909
      %v1954 = vpack.c.b16 %v1914, %v1910
      %v1955 = vpack.c.b16 %v1919, %v1915
      %v1956 = vpack.c.b16 %v1920, %v1916
      %v1957 = vpack.c.b16 %v1921, %v1917
      %v1958 = vpack.c.b16 %v1922, %v1918
      %v1996 = vsel %vm1150, %v1813, 0
      %1998 = vmatprep.subr.bf16.mxu0 %v1952
      %1999 = vmatpush1.bf16.msra.mxu0 %v1951
      %2000 = vmatprep.subr.bf16.mxu0 %v1948
      %2001 = vmatpush1.bf16.msra.mxu0 %v1947
      %2002 = vmatprep.subr.bf16.mxu0 %v1944
      %2003 = vmatpush1.bf16.msra.mxu0 %v1943
      %2004 = vmatprep.subr.bf16.mxu0 %v1940
      %2005 = vmatpush1.bf16.msra.mxu0 %v1939
      %2006 = vmatprep.subr.bf16.mxu0 %v1936
      %2007 = vmatpush1.bf16.msra.mxu0 %v1935
      %2008 = vmatprep.subr.bf16.mxu0 %v1932
      %2009 = vmatpush1.bf16.msra.mxu0 %v1931
      %2010 = vmatprep.subr.bf16.mxu0 %v1928
      %2011 = vmatpush1.bf16.msra.mxu0 %v1927
      %2012 = vmatprep.subr.bf16.mxu0 %v1924
      %2013 = vmatpush1.bf16.msra.mxu0 %v1923
      %2014 = vmatprep.subr.bf16.mxu0 0
      %2015 = vmatpush2.bf16.msra.mxu0 0
      %2016 = vmatprep.subr.bf16.mxu0 0
      %2017 = vmatpush2.bf16.msra.mxu0 0
      %2018 = vmatprep.subr.bf16.mxu0 0
      %2019 = vmatpush2.bf16.msra.mxu0 0
      %2020 = vmatprep.subr.bf16.mxu0 0
      %2021 = vmatpush2.bf16.msra.mxu0 0
      %2022 = vmatprep.subr.bf16.mxu0 0
      %2023 = vmatpush2.bf16.msra.mxu0 0
      %2024 = vmatprep.subr.bf16.mxu0 0
      %2025 = vmatpush2.bf16.msra.mxu0 0
      %2026 = vmatprep.subr.bf16.mxu0 0
      %2027 = vmatpush2.bf16.msra.mxu0 0
      %2028 = vmatprep.subr.bf16.mxu0 %v1956
      %2029 = vmatpush2.bf16.msra.mxu0 %v1955
      %2030 = vmatprep.mubr.bf16.mxu0 %v1996
      %2031 = vmatmul.mubr.bf16.gmra.mxu0 %v1812
      %v2032 = vpop.f32.mrf.mxu0
      %v2033 = vadd.f32 %v1799, %v2032
      %v2034 = vpop.f32.mrf.mxu0
      %v2035 = vadd.f32 %v1799, %v2034
      %v2036 = vpop.f32.mrf.mxu0
      %v2037 = vadd.f32 %v1804, %v2036
      %v2038 = vpop.f32.mrf.mxu0
      %v2039 = vadd.f32 %v1804, %v2038
      %2040 = vdwg.mxu0
      %2041 = vmatprep.subr.bf16.mxu0 %v1954
      %2042 = vmatpush1.bf16.msra.mxu0 %v1953
      %2043 = vmatprep.subr.bf16.mxu0 %v1950
      %2044 = vmatpush1.bf16.msra.mxu0 %v1949
      %2045 = vmatprep.subr.bf16.mxu0 %v1946
      %2046 = vmatpush1.bf16.msra.mxu0 %v1945
      %2047 = vmatprep.subr.bf16.mxu0 %v1942
      %2048 = vmatpush1.bf16.msra.mxu0 %v1941
      %2049 = vmatprep.subr.bf16.mxu0 %v1938
      %2050 = vmatpush1.bf16.msra.mxu0 %v1937
      %2051 = vmatprep.subr.bf16.mxu0 %v1934
      %2052 = vmatpush1.bf16.msra.mxu0 %v1933
      %2053 = vmatprep.subr.bf16.mxu0 %v1930
      %2054 = vmatpush1.bf16.msra.mxu0 %v1929
      %2055 = vmatprep.subr.bf16.mxu0 %v1926
      %2056 = vmatpush1.bf16.msra.mxu0 %v1925
      %2057 = vmatprep.subr.bf16.mxu0 0
      %2058 = vmatpush2.bf16.msra.mxu0 0
      %2059 = vmatprep.subr.bf16.mxu0 0
      %2060 = vmatpush2.bf16.msra.mxu0 0
      %2061 = vmatprep.subr.bf16.mxu0 0
      %2062 = vmatpush2.bf16.msra.mxu0 0
      %2063 = vmatprep.subr.bf16.mxu0 0
      %2064 = vmatpush2.bf16.msra.mxu0 0
      %2065 = vmatprep.subr.bf16.mxu0 0
      %2066 = vmatpush2.bf16.msra.mxu0 0
      %2067 = vmatprep.subr.bf16.mxu0 0
      %2068 = vmatpush2.bf16.msra.mxu0 0
      %2069 = vmatprep.subr.bf16.mxu0 0
      %2070 = vmatpush2.bf16.msra.mxu0 0
      %2071 = vmatprep.subr.bf16.mxu0 %v1958
      %2072 = vmatpush2.bf16.msra.mxu0 %v1957
      %2073 = vmatprep.mubr.bf16.mxu0 %v1996
      %2074 = vmatmul.mubr.bf16.gmra.mxu0 %v1812
      %v2075 = vpop.f32.mrf.mxu0
      %v2076 = vadd.f32 %v1799, %v2075
      %v2077 = vpop.f32.mrf.mxu0
      %v2078 = vadd.f32 %v1799, %v2077
      %v2079 = vpop.f32.mrf.mxu0
      %v2080 = vadd.f32 %v1804, %v2079
      %v2081 = vpop.f32.mrf.mxu0
      %v2082 = vadd.f32 %v1804, %v2081
      %2083 = vdwg.mxu0
      %v2084 = vmax.f32 %v2033, 0.0
      %v2085 = vmax.f32 %v2035, 0.0
      %v2086 = vmax.f32 %v2076, 0.0
      %v2087 = vmax.f32 %v2078, 0.0
      %v2088 = vmax.f32 %v2037, 0.0
      %v2089 = vmax.f32 %v2039, 0.0
      %v2090 = vmax.f32 %v2080, 0.0
      %v2091 = vmax.f32 %v2082, 0.0
      %v2092 = vsub.f32 %v2084, %v2086
      %v2093 = vsub.f32 %v2085, %v2087
      %v2094 = vsub.f32 %v2086, %v2084
      %v2095 = vsub.f32 %v2087, %v2085
      %v2096 = vsub.f32 %v2088, %v2090
      %v2097 = vsub.f32 %v2089, %v2091
      %v2098 = vsub.f32 %v2090, %v2088
      %v2099 = vsub.f32 %v2091, %v2089
      %v2100 = vlaneseq
      %v2101 = vshrl.u32 %v2100, 7
      %v2102 = vsub.s32 1, %v2101
      %v2103 = vrot.slane %v261, %v2102
      %v2104 = vlaneseq
      %v2105 = vshrl.u32 %v2104, 7
      %v2106 = vsub.s32 1, %v2105
      %v2107 = vrot.slane %v262, %v2106
      %v2108 = vlaneseq
      %v2109 = vshrl.u32 %v2108, 7
      %v2110 = vsub.s32 1, %v2109
      %v2111 = vrot.slane %v263, %v2110
      %v2112 = vlaneseq
      %v2113 = vshrl.u32 %v2112, 7
      %v2114 = vsub.s32 1, %v2113
      %v2115 = vrot.slane %v264, %v2114
      %v2116 = vmul.f32 %v2092, %v2103
      %v2117 = vmul.f32 %v2093, %v2107
      %v2118 = vmul.f32 %v2094, %v2111
      %v2119 = vmul.f32 %v2095, %v2115
      %v2120 = vmul.f32 %v2096, %v2103
      %v2121 = vmul.f32 %v2097, %v2107
      %v2122 = vmul.f32 %v2098, %v2111
      %v2123 = vmul.f32 %v2099, %v2115
      %v2124 = vmul.f32 %v2116, %v2116
      %v2125 = vmul.f32 %v2117, %v2117
      %v2126 = vmul.f32 %v2118, %v2118
      %v2127 = vmul.f32 %v2119, %v2119
      %v2128 = vmul.f32 %v2120, %v2120
      %v2129 = vmul.f32 %v2121, %v2121
      %v2130 = vmul.f32 %v2122, %v2122
      %v2131 = vmul.f32 %v2123, %v2123
      %v2132 = vadd.f32 %v2124, %v2125
      %v2133 = vadd.f32 %v2132, %v2126
      %v2134 = vadd.f32 %v2133, %v2127
      %v2135 = vadd.f32 %v2134, %v2128
      %v2136 = vadd.f32 %v2135, %v2129
      %v2137 = vadd.f32 %v2136, %v2130
      %v2138 = vadd.f32 %v2137, %v2131
      %2139 = vadd.xlane.f32.xlu0 %v2138
      %v2140 = vpop.xlane.xlu0 %2139
      %v2141 = vrot.slane %v2140, 4
      %v2142 = vadd.f32 %v2140, %v2141
      %v2143 = vrot.slane %v2142, 2
      %v2144 = vadd.f32 %v2142, %v2143
      %v2145 = vrot.slane %v2144, 1
      %v2146 = vadd.f32 %v2144, %v2145
      %s2147 = vtos %v2146
      %v2148 = vstv %s2147
      %v2149 = vmul.f32 %v2148, 0.00024414063
      %vm2150 = vcmask 0
      %2151 = vst.msk [vmem:[%s247] sm:$0x1] %vm2150, %v2149
      %p2152 = scmp.lt.s32.totalorder %s17, 1
      %s2153 = scalar_select %p2152, %s17, 1
      %s2154 = scalar_lea.vmem %s6, %s2153
      // Predicated region
      $region45: #{content_loss.1} parent=43 // pred_check
        %p2155 = pneg %p166
      $region46: #{content_loss.1} parent=43 // pred_check_branch
        %2157 = sbr.rel (%p2155) target = $region48
      $region47: #{content_loss.1} parent=43 // pred_region
        _
      $region48: #{content_loss.1} parent=43 // pred_fallthru
        _
    $region44: #{content_loss.1} parent=5 // pred_fallthru
      _
    %p2158 = scmp.le.s32.totalorder 2, %s12
    // Predicated region
    $region49: #{content_loss.1} parent=5 // pred_check
      %p2159 = pneg %p2158
    $region50: #{content_loss.1} parent=5 // pred_check_branch
      %2161 = sbr.rel (%p2159) target = $region52
    $region51: #{content_loss.1} parent=5 // pred_region
      %s2162 = ssub.s32 %s12, 2
      // Predicated region
      $region53: #{content_loss.1} parent=51 // pred_check
        %p2163 = pneg %p172
      $region54: #{content_loss.1} parent=51 // pred_check_branch
        %2165 = sbr.rel (%p2163) target = $region56
      $region55: #{content_loss.1} parent=51 // pred_region
        %p2166 = scmp.lt.s32.totalorder %s18, 1
        %s2167 = scalar_select %p2166, %s18, 1
        %s2168 = scalar_lea.vmem %s6, %s2167
      $region56: #{content_loss.1} parent=51 // pred_fallthru
        _
    $region52: #{content_loss.1} parent=5 // pred_fallthru
      _
  $region6: #{content_loss.1} parent=0 // loop_footer
    %s16 = sadd.s32 1, %s12
  $region7: #{content_loss.1} parent=0 // loop_footer_branch
    %11 = sbr.rel target = $region3
  $region8: #{content_loss.1} parent=0 // loop_exit
    _

</llo_original>
